<compile_context>
chip_gen: v7x
topology: tpu7x:2x2x1
jax: 0.10.0
libtpu: 0.0.40
codegen_flags: <defaults>
</compile_context>

<pallas_src>
import functools

import jax
import jax.numpy as jnp
import numpy as np
from jax import lax
from jax.experimental import pallas as pl
from jax.experimental.pallas import tpu as pltpu


def _asp_kernel(x_ref, w1_ref, b1_ref, w2_ref, b2_ref, out_ref,
                m_ref, z_ref, sx_ref, sxx_ref,
                *, t_total, t_tile, ragged, compute_dtype):
    # x_ref: (C, Tt)   w1: (BN, C)  b1: (BN, 1)  w2: (C, BN)  b2: (C, 1)
    # out_ref: (2, C)  scratch m/z/sx/sxx: (C, 1) f32 carried across the T grid axis.
    t = pl.program_id(1)
    last_t = pl.num_programs(1) - 1

    @pl.when(t == 0)
    def _init():
        m_ref[...] = jnp.full(m_ref.shape, -jnp.inf, m_ref.dtype)
        z_ref[...] = jnp.zeros(z_ref.shape, z_ref.dtype)
        sx_ref[...] = jnp.zeros(sx_ref.shape, sx_ref.dtype)
        sxx_ref[...] = jnp.zeros(sxx_ref.shape, sxx_ref.dtype)

    x = x_ref[...]                                                    # (C, Tt)
    if ragged:
        # Ragged last tile: columns >= (t_total - t*t_tile) are out-of-bounds padding.
        valid = t_total - t * t_tile                                  # >= 1 on every visited tile
        col = lax.broadcasted_iota(jnp.int32, x.shape, 1)
        mask = col < valid
        x = jnp.where(mask, x, 0)                                     # keep NaN/garbage out

    xf = x.astype(jnp.float32)      # statistics path: original-precision x, f32 math
    xc = x.astype(compute_dtype)    # MXU operand (bf16 by default), cast fused in VMEM

    # linear1 (1x1 conv) + tanh -> (BN, Tt); linear2 -> (C, Tt).  f32 accumulation.
    h = jnp.tanh(
        jnp.dot(w1_ref[...], xc, preferred_element_type=jnp.float32) + b1_ref[...]
    )
    logits = (
        jnp.dot(w2_ref[...], h.astype(compute_dtype),
                preferred_element_type=jnp.float32)
        + b2_ref[...]
    )                                                                 # (C, Tt) f32
    if ragged:
        logits = jnp.where(mask, logits, -jnp.inf)                    # padded cols -> e = 0

    # --- online softmax over the time axis (dim=2 of the PyTorch module) ---
    m_tile = jnp.max(logits, axis=-1, keepdims=True)                  # (C, 1)
    m_new = jnp.maximum(m_ref[...], m_tile)                           # (C, 1)
    corr = jnp.exp(m_ref[...] - m_new)                                # (C, 1)
    e = jnp.exp(logits - m_new)                                       # (C, Tt)

    ex = e * xf                                                       # (C, Tt) f32
    ex2 = ex * xf                                                     # (C, Tt) f32

    z_ref[...] = corr * z_ref[...] + jnp.sum(e, axis=-1, keepdims=True)
    sx_ref[...] = corr * sx_ref[...] + jnp.sum(ex, axis=-1, keepdims=True)
    sxx_ref[...] = corr * sxx_ref[...] + jnp.sum(ex2, axis=-1, keepdims=True)
    m_ref[...] = m_new

    @pl.when(t == last_t)
    def _finalize():
        # 1/Z normalization folded into the final (C,)-length vectors (alpha never built).
        inv_z = pl.reciprocal(z_ref[...], approx=False)               # (C, 1)
        mean = sx_ref[...] * inv_z                                    # (C, 1)
        var = sxx_ref[...] * inv_z - mean * mean
        std = jnp.sqrt(jnp.clip(var, 1e-9, None))
        # (C, 1) columns -> (C,) lane vectors, two full-row lane-0-aligned stores.
        out_ref[0, :] = jnp.sum(mean, axis=-1).astype(out_ref.dtype)
        out_ref[1, :] = jnp.sum(std, axis=-1).astype(out_ref.dtype)


def _vmem_capacity_bytes():
    try:
        return int(pltpu.get_tpu_info().vmem_capacity_bytes)
    except Exception:
        return 64 << 20          # conservative default: v7x per-TensorCore VMEM


def _plan(C, BN, x_itemsize, c_itemsize):
    """Generation-aware tile / VMEM planning."""
    cap = _vmem_capacity_bytes()
    budget = int(0.70 * cap)                     # headroom for Mosaic internal scratch
    x_buffers = 3 if cap >= (96 << 20) else 2    # deeper x pipeline on 128 MiB parts
    # Bytes per time column: x buffers + in-kernel compute-dtype cast of x
    # + ~5 f32 (C,)-column temporaries (logits, e, ex, ex2, mask/where) + h rows.
    per_col = (x_buffers * C * x_itemsize + C * c_itemsize
               + 5 * 4 * C + (4 + c_itemsize) * BN)
    # Resident weights (<= 2 buffers each) + fixed margin for biases/output/carries.
    fixed = 2 * 2 * BN * C * c_itemsize + (4 << 20)
    t_cap = max(128, ((budget - fixed) // per_col) // 128 * 128)
    t_target = int(min(t_cap, 1024 if cap >= (96 << 20) else 512))
    return t_target, x_buffers, budget, per_col, fixed


def attentive_stats_pool(x, w1, b1, w2, b2, *, t_tile=None,
                         compute_dtype=jnp.bfloat16):
    """x: (B, C, T). w1: (BN, C), b1: (BN,), w2: (C, BN), b2: (C,). Returns (B, 2C) f32.

    compute_dtype: MXU operand dtype (default bf16, f32 accumulation).  x is streamed
    at its own dtype (pass bf16 x from the producer to halve HBM traffic); the softmax
    and weighted statistics always use the streamed x values with f32 accumulators.
    Use compute_dtype=jnp.float32 for exact parity with the PyTorch module.
    """
    B, C, T = x.shape
    BN = w1.shape[0]

    c_dtype = jnp.dtype(compute_dtype)
    x_itemsize = jnp.dtype(x.dtype).itemsize
    t_target, x_buffers, budget, per_col, fixed = _plan(C, BN, x_itemsize,
                                                        c_dtype.itemsize)

    if t_tile is None:
        # Small T: one full-extent block (no (8,128) issue, no mask).  Long T: stream
        # in budget-sized multiples of 128 with an online-softmax carry.
        t_tile = T if T <= t_target else t_target
    n_t = (T + t_tile - 1) // t_tile
    ragged = (T % t_tile) != 0

    need = fixed + per_col * t_tile
    vmem_limit = int(min(budget, max(need, 32 << 20)))

    # Weights cast once here (tiny, one-time); x is NOT cast in the wrapper.
    w1c = w1.astype(c_dtype)
    w2c = w2.astype(c_dtype)
    b1_2d = b1.reshape(BN, 1).astype(jnp.float32)
    b2_2d = b2.reshape(C, 1).astype(jnp.float32)

    kernel = functools.partial(_asp_kernel, t_total=T, t_tile=t_tile,
                               ragged=ragged, compute_dtype=c_dtype)

    def build(use_pipeline_mode):
        w_kw = {"pipeline_mode": pl.Buffered(1)} if use_pipeline_mode else {}
        x_kw = ({"pipeline_mode": pl.Buffered(x_buffers)}
                if (use_pipeline_mode and x_buffers != 2) else {})
        grid_spec = pltpu.PrefetchScalarGridSpec(
            num_scalar_prefetch=0,
            grid=(B, n_t),
            in_specs=[
                # x: one (C, t_tile) slab per (batch, time-tile) grid step.
                pl.BlockSpec((pl.Squeezed(), C, t_tile), lambda b, t: (b, 0, t), **x_kw),
                # Weights/biases: constant index maps -> resident across the grid;
                # single-buffered when the installed Pallas supports pipeline_mode.
                pl.BlockSpec((BN, C), lambda b, t: (0, 0), **w_kw),
                pl.BlockSpec((BN, 1), lambda b, t: (0, 0), **w_kw),
                pl.BlockSpec((C, BN), lambda b, t: (0, 0), **w_kw),
                pl.BlockSpec((C, 1), lambda b, t: (0, 0), **w_kw),
            ],
            # Lane-dense (2, C) output rows per batch element, written once at the
            # last time tile; reshape to (B, 2C) == concat([mean, std], 1) below.
            out_specs=pl.BlockSpec((pl.Squeezed(), 2, C), lambda b, t: (b, 0, 0)),
            scratch_shapes=[
                pltpu.VMEM((C, 1), jnp.float32),   # running max
                pltpu.VMEM((C, 1), jnp.float32),   # running Z = sum(e)
                pltpu.VMEM((C, 1), jnp.float32),   # running sum(e*x)
                pltpu.VMEM((C, 1), jnp.float32),   # running sum(e*x^2)
            ],
        )
        return pl.pallas_call(
            kernel,
            out_shape=jax.ShapeDtypeStruct((B, 2, C), jnp.float32),
            grid_spec=grid_spec,
            compiler_params=pltpu.CompilerParams(
                dimension_semantics=("parallel", "arbitrary"),
                vmem_limit_bytes=vmem_limit,
            ),
        )

    try:
        out3d = build(True)(x, w1c, b1_2d, w2c, b2_2d)
    except Exception:
        # pipeline_mode not supported by this Pallas build -> default double buffering.
        out3d = build(False)(x, w1c, b1_2d, w2c, b2_2d)
    return out3d.reshape(B, 2 * C)


def _reference(x, w1, b1, w2, b2):
    # Pure-JAX reference mirroring the PyTorch forward exactly.
    h = jnp.tanh(jnp.einsum("oc,bct->bot", w1, x) + b1[None, :, None])
    logits = jnp.einsum("co,bot->bct", w2, h) + b2[None, :, None]
    alpha = jax.nn.softmax(logits, axis=2)
    mean = jnp.sum(alpha * x, axis=2)
    residuals = jnp.sum(alpha * x**2, axis=2) - mean**2
    std = jnp.sqrt(jnp.clip(residuals, 1e-9, None))
    return jnp.concatenate([mean, std], axis=1)


if __name__ == "__main__":
    # Small shapes consistent with the module: B=2, in_dim=16, T=32, bottleneck=8.
    B, C, T, BN = 2, 16, 32, 8

    key = jax.random.PRNGKey(0)
    kx, kw1, kb1, kw2, kb2, kx2 = jax.random.split(key, 6)

    x = jax.random.normal(kx, (B, C, T), dtype=jnp.float32)
    w1 = jax.random.normal(kw1, (BN, C), dtype=jnp.float32) * (1.0 / np.sqrt(C))
    b1 = jax.random.normal(kb1, (BN,), dtype=jnp.float32) * 0.1
    w2 = jax.random.normal(kw2, (C, BN), dtype=jnp.float32) * (1.0 / np.sqrt(BN))
    b2 = jax.random.normal(kb2, (C,), dtype=jnp.float32) * 0.1

    ref = jax.block_until_ready(_reference(x, w1, b1, w2, b2))

    # Exact-parity f32 path: matches the PyTorch forward to tight tolerance.
    out_f32 = jax.block_until_ready(
        attentive_stats_pool(x, w1, b1, w2, b2, compute_dtype=jnp.float32))
    np.testing.assert_allclose(np.asarray(out_f32), np.asarray(ref), rtol=1e-5, atol=1e-5)

    # Default path: bf16 matmul operands, f32 accumulation, f32 statistics from f32 x.
    out_bf16 = jax.block_until_ready(attentive_stats_pool(x, w1, b1, w2, b2))
    np.testing.assert_allclose(np.asarray(out_bf16), np.asarray(ref), rtol=5e-2, atol=5e-2)

    # Ragged-T path: T not a multiple of the tile -> in-kernel mask (f32 for tight check).
    T2 = 200
    x2 = jax.random.normal(kx2, (B, C, T2), dtype=jnp.float32)
    ref2 = jax.block_until_ready(_reference(x2, w1, b1, w2, b2))
    out2 = jax.block_until_ready(
        attentive_stats_pool(x2, w1, b1, w2, b2, t_tile=128, compute_dtype=jnp.float32))
    np.testing.assert_allclose(np.asarray(out2), np.asarray(ref2), rtol=1e-5, atol=1e-5)

    print("KERNEL_OK")
</pallas_src>

<mosaic_0001>
module attributes {stable_mosaic.version = 11 : i64} {
  func.func @_asp_kernel(%arg0: i32, %arg1: i32, %arg2: memref<1x16x32xf32, #tpu.memory_space<vmem>>, %arg3: memref<8x16xf32, #tpu.memory_space<vmem>>, %arg4: memref<8x1xf32, #tpu.memory_space<vmem>>, %arg5: memref<16x8xf32, #tpu.memory_space<vmem>>, %arg6: memref<16x1xf32, #tpu.memory_space<vmem>>, %arg7: memref<1x2x16xf32, #tpu.memory_space<vmem>>, %arg8: memref<16x1xf32, #tpu.memory_space<vmem>>, %arg9: memref<16x1xf32, #tpu.memory_space<vmem>>, %arg10: memref<16x1xf32, #tpu.memory_space<vmem>>, %arg11: memref<16x1xf32, #tpu.memory_space<vmem>>) attributes {dimension_semantics = [#tpu.dimension_semantics<parallel>, #tpu.dimension_semantics<arbitrary>], iteration_bounds = array<i64: 2, 1>, scalar_prefetch = 0 : i64, scratch_operands = 4 : i64, tpu.core_type = #tpu.core_type<tc>, window_params = [{transform_indices = @transform_0, window_bounds = array<i64: 1, 16, 32>}, {pipeline_mode = #tpu.pipeline_mode<synchronous>, transform_indices = @transform_1, window_bounds = array<i64: 8, 16>}, {pipeline_mode = #tpu.pipeline_mode<synchronous>, transform_indices = @transform_2, window_bounds = array<i64: 8, 1>}, {pipeline_mode = #tpu.pipeline_mode<synchronous>, transform_indices = @transform_3, window_bounds = array<i64: 16, 8>}, {pipeline_mode = #tpu.pipeline_mode<synchronous>, transform_indices = @transform_4, window_bounds = array<i64: 16, 1>}, {transform_indices = @transform_5, window_bounds = array<i64: 1, 2, 16>}]} {
    %c0_i32 = arith.constant 0 : i32
    %0 = arith.cmpi eq, %arg1, %c0_i32 : i32
    %1 = arith.extui %0 : i1 to i32
    %c0_i32_0 = arith.constant 0 : i32
    %2 = arith.cmpi ne, %1, %c0_i32_0 : i32
    scf.if %2 {
      %cst_36 = arith.constant 0xFF800000 : f32
      %50 = vector.broadcast %cst_36 : f32 to vector<16x1xf32>
      %c0_37 = arith.constant 0 : index
      %c0_38 = arith.constant 0 : index
      %51 = vector.load %arg8[%c0_37, %c0_38] : memref<16x1xf32, #tpu.memory_space<vmem>>, vector<16x1xf32>
      tpu.vector_store %arg8[%c0_37, %c0_38], %50 {strides = array<i32>} : memref<16x1xf32, #tpu.memory_space<vmem>>, vector<16x1xf32>,
      %cst_39 = arith.constant 0.000000e+00 : f32
      %52 = vector.broadcast %cst_39 : f32 to vector<16x1xf32>
      %c0_40 = arith.constant 0 : index
      %c0_41 = arith.constant 0 : index
      %53 = vector.load %arg9[%c0_40, %c0_41] : memref<16x1xf32, #tpu.memory_space<vmem>>, vector<16x1xf32>
      tpu.vector_store %arg9[%c0_40, %c0_41], %52 {strides = array<i32>} : memref<16x1xf32, #tpu.memory_space<vmem>>, vector<16x1xf32>,
      %cst_42 = arith.constant 0.000000e+00 : f32
      %54 = vector.broadcast %cst_42 : f32 to vector<16x1xf32>
      %c0_43 = arith.constant 0 : index
      %c0_44 = arith.constant 0 : index
      %55 = vector.load %arg10[%c0_43, %c0_44] : memref<16x1xf32, #tpu.memory_space<vmem>>, vector<16x1xf32>
      tpu.vector_store %arg10[%c0_43, %c0_44], %54 {strides = array<i32>} : memref<16x1xf32, #tpu.memory_space<vmem>>, vector<16x1xf32>,
      %cst_45 = arith.constant 0.000000e+00 : f32
      %56 = vector.broadcast %cst_45 : f32 to vector<16x1xf32>
      %c0_46 = arith.constant 0 : index
      %c0_47 = arith.constant 0 : index
      %57 = vector.load %arg11[%c0_46, %c0_47] : memref<16x1xf32, #tpu.memory_space<vmem>>, vector<16x1xf32>
      tpu.vector_store %arg11[%c0_46, %c0_47], %56 {strides = array<i32>} : memref<16x1xf32, #tpu.memory_space<vmem>>, vector<16x1xf32>,
    } else {
    }
    %c0 = arith.constant 0 : index
    %c0_1 = arith.constant 0 : index
    %c0_2 = arith.constant 0 : index
    %3 = vector.load %arg2[%c0, %c0_1, %c0_2] : memref<1x16x32xf32, #tpu.memory_space<vmem>>, vector<1x16x32xf32>
    %4 = vector.shape_cast %3 : vector<1x16x32xf32> to vector<16x32xf32>
    %c0_3 = arith.constant 0 : index
    %c0_4 = arith.constant 0 : index
    %5 = vector.load %arg3[%c0_3, %c0_4] : memref<8x16xf32, #tpu.memory_space<vmem>>, vector<8x16xf32>
    %cst = arith.constant dense<0.000000e+00> : vector<8x32xf32>
    %6 = tpu.matmul %5, %4, %cst {dimension_numbers = #tpu.dot_dimension_numbers<[1], [0], [0], [1], [0, 0, 1, 1], [], []>} : vector<8x16xf32>, vector<16x32xf32>, vector<8x32xf32> -> vector<8x32xf32>
    %c0_5 = arith.constant 0 : index
    %c0_6 = arith.constant 0 : index
    %7 = vector.load %arg4[%c0_5, %c0_6] : memref<8x1xf32, #tpu.memory_space<vmem>>, vector<8x1xf32>
    %8 = vector.broadcast %7 : vector<8x1xf32> to vector<8x32xf32>
    %9 = arith.addf %6, %8 : vector<8x32xf32>
    %10 = math.tanh %9 : vector<8x32xf32>
    %c0_7 = arith.constant 0 : index
    %c0_8 = arith.constant 0 : index
    %11 = vector.load %arg5[%c0_7, %c0_8] : memref<16x8xf32, #tpu.memory_space<vmem>>, vector<16x8xf32>
    %cst_9 = arith.constant dense<0.000000e+00> : vector<16x32xf32>
    %12 = tpu.matmul %11, %10, %cst_9 {dimension_numbers = #tpu.dot_dimension_numbers<[1], [0], [0], [1], [0, 0, 1, 1], [], []>} : vector<16x8xf32>, vector<8x32xf32>, vector<16x32xf32> -> vector<16x32xf32>
    %c0_10 = arith.constant 0 : index
    %c0_11 = arith.constant 0 : index
    %13 = vector.load %arg6[%c0_10, %c0_11] : memref<16x1xf32, #tpu.memory_space<vmem>>, vector<16x1xf32>
    %14 = vector.broadcast %13 : vector<16x1xf32> to vector<16x32xf32>
    %15 = arith.addf %12, %14 : vector<16x32xf32>
    %cst_12 = arith.constant dense<0xFF800000> : vector<16xf32>
    %16 = vector.multi_reduction <maximumf>, %15, %cst_12 [1] : vector<16x32xf32> to vector<16xf32>
    %17 = vector.shape_cast %16 : vector<16xf32> to vector<16x1xf32>
    %c0_13 = arith.constant 0 : index
    %c0_14 = arith.constant 0 : index
    %18 = vector.load %arg8[%c0_13, %c0_14] : memref<16x1xf32, #tpu.memory_space<vmem>>, vector<16x1xf32>
    %19 = arith.maximumf %18, %17 : vector<16x1xf32>
    %c0_15 = arith.constant 0 : index
    %c0_16 = arith.constant 0 : index
    %20 = vector.load %arg8[%c0_15, %c0_16] : memref<16x1xf32, #tpu.memory_space<vmem>>, vector<16x1xf32>
    %21 = arith.subf %20, %19 : vector<16x1xf32>
    %22 = math.exp %21 : vector<16x1xf32>
    %23 = vector.broadcast %19 : vector<16x1xf32> to vector<16x32xf32>
    %24 = arith.subf %15, %23 : vector<16x32xf32>
    %25 = math.exp %24 : vector<16x32xf32>
    %26 = arith.mulf %25, %4 : vector<16x32xf32>
    %27 = arith.mulf %26, %4 : vector<16x32xf32>
    %c0_17 = arith.constant 0 : index
    %c0_18 = arith.constant 0 : index
    %28 = vector.load %arg9[%c0_17, %c0_18] : memref<16x1xf32, #tpu.memory_space<vmem>>, vector<16x1xf32>
    %29 = arith.mulf %22, %28 : vector<16x1xf32>
    %cst_19 = arith.constant dense<0.000000e+00> : vector<16xf32>
    %30 = vector.multi_reduction <add>, %25, %cst_19 [1] : vector<16x32xf32> to vector<16xf32>
    %31 = vector.shape_cast %30 : vector<16xf32> to vector<16x1xf32>
    %32 = arith.addf %29, %31 : vector<16x1xf32>
    %c0_20 = arith.constant 0 : index
    %c0_21 = arith.constant 0 : index
    %33 = vector.load %arg9[%c0_20, %c0_21] : memref<16x1xf32, #tpu.memory_space<vmem>>, vector<16x1xf32>
    tpu.vector_store %arg9[%c0_20, %c0_21], %32 {strides = array<i32>} : memref<16x1xf32, #tpu.memory_space<vmem>>, vector<16x1xf32>,
    %c0_22 = arith.constant 0 : index
    %c0_23 = arith.constant 0 : index
    %34 = vector.load %arg10[%c0_22, %c0_23] : memref<16x1xf32, #tpu.memory_space<vmem>>, vector<16x1xf32>
    %35 = arith.mulf %22, %34 : vector<16x1xf32>
    %cst_24 = arith.constant dense<0.000000e+00> : vector<16xf32>
    %36 = vector.multi_reduction <add>, %26, %cst_24 [1] : vector<16x32xf32> to vector<16xf32>
    %37 = vector.shape_cast %36 : vector<16xf32> to vector<16x1xf32>
    %38 = arith.addf %35, %37 : vector<16x1xf32>
    %c0_25 = arith.constant 0 : index
    %c0_26 = arith.constant 0 : index
    %39 = vector.load %arg10[%c0_25, %c0_26] : memref<16x1xf32, #tpu.memory_space<vmem>>, vector<16x1xf32>
    tpu.vector_store %arg10[%c0_25, %c0_26], %38 {strides = array<i32>} : memref<16x1xf32, #tpu.memory_space<vmem>>, vector<16x1xf32>,
    %c0_27 = arith.constant 0 : index
    %c0_28 = arith.constant 0 : index
    %40 = vector.load %arg11[%c0_27, %c0_28] : memref<16x1xf32, #tpu.memory_space<vmem>>, vector<16x1xf32>
    %41 = arith.mulf %22, %40 : vector<16x1xf32>
    %cst_29 = arith.constant dense<0.000000e+00> : vector<16xf32>
    %42 = vector.multi_reduction <add>, %27, %cst_29 [1] : vector<16x32xf32> to vector<16xf32>
    %43 = vector.shape_cast %42 : vector<16xf32> to vector<16x1xf32>
    %44 = arith.addf %41, %43 : vector<16x1xf32>
    %c0_30 = arith.constant 0 : index
    %c0_31 = arith.constant 0 : index
    %45 = vector.load %arg11[%c0_30, %c0_31] : memref<16x1xf32, #tpu.memory_space<vmem>>, vector<16x1xf32>
    tpu.vector_store %arg11[%c0_30, %c0_31], %44 {strides = array<i32>} : memref<16x1xf32, #tpu.memory_space<vmem>>, vector<16x1xf32>,
    %c0_32 = arith.constant 0 : index
    %c0_33 = arith.constant 0 : index
    %46 = vector.load %arg8[%c0_32, %c0_33] : memref<16x1xf32, #tpu.memory_space<vmem>>, vector<16x1xf32>
    tpu.vector_store %arg8[%c0_32, %c0_33], %19 {strides = array<i32>} : memref<16x1xf32, #tpu.memory_space<vmem>>, vector<16x1xf32>,
    %c0_i32_34 = arith.constant 0 : i32
    %47 = arith.cmpi eq, %arg1, %c0_i32_34 : i32
    %48 = arith.extui %47 : i1 to i32
    %c0_i32_35 = arith.constant 0 : i32
    %49 = arith.cmpi ne, %48, %c0_i32_35 : i32
    scf.if %49 {
      %c0_36 = arith.constant 0 : index
      %c0_37 = arith.constant 0 : index
      %50 = vector.load %arg9[%c0_36, %c0_37] : memref<16x1xf32, #tpu.memory_space<vmem>>, vector<16x1xf32>
      %51 = tpu.reciprocal %50 : vector<16x1xf32> -> vector<16x1xf32>
      %c0_38 = arith.constant 0 : index
      %c0_39 = arith.constant 0 : index
      %52 = vector.load %arg10[%c0_38, %c0_39] : memref<16x1xf32, #tpu.memory_space<vmem>>, vector<16x1xf32>
      %53 = arith.mulf %52, %51 : vector<16x1xf32>
      %c0_40 = arith.constant 0 : index
      %c0_41 = arith.constant 0 : index
      %54 = vector.load %arg11[%c0_40, %c0_41] : memref<16x1xf32, #tpu.memory_space<vmem>>, vector<16x1xf32>
      %55 = arith.mulf %54, %51 : vector<16x1xf32>
      %56 = arith.mulf %53, %53 : vector<16x1xf32>
      %57 = arith.subf %55, %56 : vector<16x1xf32>
      %cst_42 = arith.constant 9.99999971E-10 : f32
      %58 = vector.broadcast %cst_42 : f32 to vector<16x1xf32>
      %59 = arith.maximumf %58, %57 : vector<16x1xf32>
      %60 = math.sqrt %59 : vector<16x1xf32>
      %cst_43 = arith.constant dense<0.000000e+00> : vector<16xf32>
      %61 = vector.multi_reduction <add>, %53, %cst_43 [1] : vector<16x1xf32> to vector<16xf32>
      %c0_44 = arith.constant 0 : index
      %c0_45 = arith.constant 0 : index
      %c0_46 = arith.constant 0 : index
      %62 = vector.load %arg7[%c0_44, %c0_45, %c0_46] : memref<1x2x16xf32, #tpu.memory_space<vmem>>, vector<1x1x16xf32>
      %63 = vector.shape_cast %62 : vector<1x1x16xf32> to vector<16xf32>
      %64 = vector.shape_cast %61 : vector<16xf32> to vector<1x1x16xf32>
      tpu.vector_store %arg7[%c0_44, %c0_45, %c0_46], %64 {strides = array<i32>} : memref<1x2x16xf32, #tpu.memory_space<vmem>>, vector<1x1x16xf32>,
      %cst_47 = arith.constant dense<0.000000e+00> : vector<16xf32>
      %65 = vector.multi_reduction <add>, %60, %cst_47 [1] : vector<16x1xf32> to vector<16xf32>
      %c0_48 = arith.constant 0 : index
      %c1 = arith.constant 1 : index
      %c0_49 = arith.constant 0 : index
      %66 = vector.load %arg7[%c0_48, %c1, %c0_49] : memref<1x2x16xf32, #tpu.memory_space<vmem>>, vector<1x1x16xf32>
      %67 = vector.shape_cast %66 : vector<1x1x16xf32> to vector<16xf32>
      %68 = vector.shape_cast %65 : vector<16xf32> to vector<1x1x16xf32>
      tpu.vector_store %arg7[%c0_48, %c1, %c0_49], %68 {strides = array<i32>} : memref<1x2x16xf32, #tpu.memory_space<vmem>>, vector<1x1x16xf32>,
    } else {
    }
    return
  }
  func.func @transform_0(%arg0: i32, %arg1: i32) -> (i32, i32, i32) {
    %c0_i32 = arith.constant 0 : i32
    %c0_i32_0 = arith.constant 0 : i32
    return %arg0, %c0_i32, %arg1 : i32, i32, i32
  }
  func.func @transform_1(%arg0: i32, %arg1: i32) -> (i32, i32) {
    %c0_i32 = arith.constant 0 : i32
    %c0_i32_0 = arith.constant 0 : i32
    %c0_i32_1 = arith.constant 0 : i32
    return %c0_i32, %c0_i32_0 : i32, i32
  }
  func.func @transform_2(%arg0: i32, %arg1: i32) -> (i32, i32) {
    %c0_i32 = arith.constant 0 : i32
    %c0_i32_0 = arith.constant 0 : i32
    %c0_i32_1 = arith.constant 0 : i32
    return %c0_i32, %c0_i32_0 : i32, i32
  }
  func.func @transform_3(%arg0: i32, %arg1: i32) -> (i32, i32) {
    %c0_i32 = arith.constant 0 : i32
    %c0_i32_0 = arith.constant 0 : i32
    %c0_i32_1 = arith.constant 0 : i32
    return %c0_i32, %c0_i32_0 : i32, i32
  }
  func.func @transform_4(%arg0: i32, %arg1: i32) -> (i32, i32) {
    %c0_i32 = arith.constant 0 : i32
    %c0_i32_0 = arith.constant 0 : i32
    %c0_i32_1 = arith.constant 0 : i32
    return %c0_i32, %c0_i32_0 : i32, i32
  }
  func.func @transform_5(%arg0: i32, %arg1: i32) -> (i32, i32, i32) {
    %c0_i32 = arith.constant 0 : i32
    %c0_i32_0 = arith.constant 0 : i32
    %c0_i32_1 = arith.constant 0 : i32
    return %arg0, %c0_i32, %c0_i32_0 : i32, i32, i32
  }
}

module attributes {stable_mosaic.version = 11 : i64} {
  func.func @_asp_kernel(%arg0: i32, %arg1: i32, %arg2: memref<1x16x32xf32, #tpu.memory_space<vmem>>, %arg3: memref<8x16xf32, #tpu.memory_space<vmem>>, %arg4: memref<8x1xf32, #tpu.memory_space<vmem>>, %arg5: memref<16x8xf32, #tpu.memory_space<vmem>>, %arg6: memref<16x1xf32, #tpu.memory_space<vmem>>, %arg7: memref<1x2x16xf32, #tpu.memory_space<vmem>>, %arg8: memref<16x1xf32, #tpu.memory_space<vmem>>, %arg9: memref<16x1xf32, #tpu.memory_space<vmem>>, %arg10: memref<16x1xf32, #tpu.memory_space<vmem>>, %arg11: memref<16x1xf32, #tpu.memory_space<vmem>>) attributes {dimension_semantics = [#tpu.dimension_semantics<parallel>, #tpu.dimension_semantics<arbitrary>], iteration_bounds = array<i64: 2, 1>, scalar_prefetch = 0 : i64, scratch_operands = 4 : i64, tpu.core_type = #tpu.core_type<tc>, window_params = [{transform_indices = @transform_0, window_bounds = array<i64: 1, 16, 32>}, {pipeline_mode = #tpu.pipeline_mode<synchronous>, transform_indices = @transform_1, window_bounds = array<i64: 8, 16>}, {pipeline_mode = #tpu.pipeline_mode<synchronous>, transform_indices = @transform_2, window_bounds = array<i64: 8, 1>}, {pipeline_mode = #tpu.pipeline_mode<synchronous>, transform_indices = @transform_3, window_bounds = array<i64: 16, 8>}, {pipeline_mode = #tpu.pipeline_mode<synchronous>, transform_indices = @transform_4, window_bounds = array<i64: 16, 1>}, {transform_indices = @transform_5, window_bounds = array<i64: 1, 2, 16>}]} {
    %c0_i32 = arith.constant 0 : i32
    %0 = arith.cmpi eq, %arg1, %c0_i32 : i32
    %1 = arith.extui %0 : i1 to i32
    %c0_i32_0 = arith.constant 0 : i32
    %2 = arith.cmpi ne, %1, %c0_i32_0 : i32
    scf.if %2 {
      %cst_36 = arith.constant 0xFF800000 : f32
      %50 = vector.broadcast %cst_36 : f32 to vector<16x1xf32>
      %c0_37 = arith.constant 0 : index
      %c0_38 = arith.constant 0 : index
      %51 = vector.load %arg8[%c0_37, %c0_38] : memref<16x1xf32, #tpu.memory_space<vmem>>, vector<16x1xf32>
      tpu.vector_store %arg8[%c0_37, %c0_38], %50 {strides = array<i32>} : memref<16x1xf32, #tpu.memory_space<vmem>>, vector<16x1xf32>,
      %cst_39 = arith.constant 0.000000e+00 : f32
      %52 = vector.broadcast %cst_39 : f32 to vector<16x1xf32>
      %c0_40 = arith.constant 0 : index
      %c0_41 = arith.constant 0 : index
      %53 = vector.load %arg9[%c0_40, %c0_41] : memref<16x1xf32, #tpu.memory_space<vmem>>, vector<16x1xf32>
      tpu.vector_store %arg9[%c0_40, %c0_41], %52 {strides = array<i32>} : memref<16x1xf32, #tpu.memory_space<vmem>>, vector<16x1xf32>,
      %cst_42 = arith.constant 0.000000e+00 : f32
      %54 = vector.broadcast %cst_42 : f32 to vector<16x1xf32>
      %c0_43 = arith.constant 0 : index
      %c0_44 = arith.constant 0 : index
      %55 = vector.load %arg10[%c0_43, %c0_44] : memref<16x1xf32, #tpu.memory_space<vmem>>, vector<16x1xf32>
      tpu.vector_store %arg10[%c0_43, %c0_44], %54 {strides = array<i32>} : memref<16x1xf32, #tpu.memory_space<vmem>>, vector<16x1xf32>,
      %cst_45 = arith.constant 0.000000e+00 : f32
      %56 = vector.broadcast %cst_45 : f32 to vector<16x1xf32>
      %c0_46 = arith.constant 0 : index
      %c0_47 = arith.constant 0 : index
      %57 = vector.load %arg11[%c0_46, %c0_47] : memref<16x1xf32, #tpu.memory_space<vmem>>, vector<16x1xf32>
      tpu.vector_store %arg11[%c0_46, %c0_47], %56 {strides = array<i32>} : memref<16x1xf32, #tpu.memory_space<vmem>>, vector<16x1xf32>,
    } else {
    }
    %c0 = arith.constant 0 : index
    %c0_1 = arith.constant 0 : index
    %c0_2 = arith.constant 0 : index
    %3 = vector.load %arg2[%c0, %c0_1, %c0_2] : memref<1x16x32xf32, #tpu.memory_space<vmem>>, vector<1x16x32xf32>
    %4 = vector.shape_cast %3 : vector<1x16x32xf32> to vector<16x32xf32>
    %c0_3 = arith.constant 0 : index
    %c0_4 = arith.constant 0 : index
    %5 = vector.load %arg3[%c0_3, %c0_4] : memref<8x16xf32, #tpu.memory_space<vmem>>, vector<8x16xf32>
    %cst = arith.constant dense<0.000000e+00> : vector<8x32xf32>
    %6 = tpu.matmul %5, %4, %cst {dimension_numbers = #tpu.dot_dimension_numbers<[1], [0], [0], [1], [0, 0, 1, 1], [], []>} : vector<8x16xf32>, vector<16x32xf32>, vector<8x32xf32> -> vector<8x32xf32>
    %c0_5 = arith.constant 0 : index
    %c0_6 = arith.constant 0 : index
    %7 = vector.load %arg4[%c0_5, %c0_6] : memref<8x1xf32, #tpu.memory_space<vmem>>, vector<8x1xf32>
    %8 = vector.broadcast %7 : vector<8x1xf32> to vector<8x32xf32>
    %9 = arith.addf %6, %8 : vector<8x32xf32>
    %10 = math.tanh %9 : vector<8x32xf32>
    %c0_7 = arith.constant 0 : index
    %c0_8 = arith.constant 0 : index
    %11 = vector.load %arg5[%c0_7, %c0_8] : memref<16x8xf32, #tpu.memory_space<vmem>>, vector<16x8xf32>
    %cst_9 = arith.constant dense<0.000000e+00> : vector<16x32xf32>
    %12 = tpu.matmul %11, %10, %cst_9 {dimension_numbers = #tpu.dot_dimension_numbers<[1], [0], [0], [1], [0, 0, 1, 1], [], []>} : vector<16x8xf32>, vector<8x32xf32>, vector<16x32xf32> -> vector<16x32xf32>
    %c0_10 = arith.constant 0 : index
    %c0_11 = arith.constant 0 : index
    %13 = vector.load %arg6[%c0_10, %c0_11] : memref<16x1xf32, #tpu.memory_space<vmem>>, vector<16x1xf32>
    %14 = vector.broadcast %13 : vector<16x1xf32> to vector<16x32xf32>
    %15 = arith.addf %12, %14 : vector<16x32xf32>
    %cst_12 = arith.constant dense<0xFF800000> : vector<16xf32>
    %16 = vector.multi_reduction <maximumf>, %15, %cst_12 [1] : vector<16x32xf32> to vector<16xf32>
    %17 = vector.shape_cast %16 : vector<16xf32> to vector<16x1xf32>
    %c0_13 = arith.constant 0 : index
    %c0_14 = arith.constant 0 : index
    %18 = vector.load %arg8[%c0_13, %c0_14] : memref<16x1xf32, #tpu.memory_space<vmem>>, vector<16x1xf32>
    %19 = arith.maximumf %18, %17 : vector<16x1xf32>
    %c0_15 = arith.constant 0 : index
    %c0_16 = arith.constant 0 : index
    %20 = vector.load %arg8[%c0_15, %c0_16] : memref<16x1xf32, #tpu.memory_space<vmem>>, vector<16x1xf32>
    %21 = arith.subf %20, %19 : vector<16x1xf32>
    %22 = math.exp %21 : vector<16x1xf32>
    %23 = vector.broadcast %19 : vector<16x1xf32> to vector<16x32xf32>
    %24 = arith.subf %15, %23 : vector<16x32xf32>
    %25 = math.exp %24 : vector<16x32xf32>
    %26 = arith.mulf %25, %4 : vector<16x32xf32>
    %27 = arith.mulf %26, %4 : vector<16x32xf32>
    %c0_17 = arith.constant 0 : index
    %c0_18 = arith.constant 0 : index
    %28 = vector.load %arg9[%c0_17, %c0_18] : memref<16x1xf32, #tpu.memory_space<vmem>>, vector<16x1xf32>
    %29 = arith.mulf %22, %28 : vector<16x1xf32>
    %cst_19 = arith.constant dense<0.000000e+00> : vector<16xf32>
    %30 = vector.multi_reduction <add>, %25, %cst_19 [1] : vector<16x32xf32> to vector<16xf32>
    %31 = vector.shape_cast %30 : vector<16xf32> to vector<16x1xf32>
    %32 = arith.addf %29, %31 : vector<16x1xf32>
    %c0_20 = arith.constant 0 : index
    %c0_21 = arith.constant 0 : index
    %33 = vector.load %arg9[%c0_20, %c0_21] : memref<16x1xf32, #tpu.memory_space<vmem>>, vector<16x1xf32>
    tpu.vector_store %arg9[%c0_20, %c0_21], %32 {strides = array<i32>} : memref<16x1xf32, #tpu.memory_space<vmem>>, vector<16x1xf32>,
    %c0_22 = arith.constant 0 : index
    %c0_23 = arith.constant 0 : index
    %34 = vector.load %arg10[%c0_22, %c0_23] : memref<16x1xf32, #tpu.memory_space<vmem>>, vector<16x1xf32>
    %35 = arith.mulf %22, %34 : vector<16x1xf32>
    %cst_24 = arith.constant dense<0.000000e+00> : vector<16xf32>
    %36 = vector.multi_reduction <add>, %26, %cst_24 [1] : vector<16x32xf32> to vector<16xf32>
    %37 = vector.shape_cast %36 : vector<16xf32> to vector<16x1xf32>
    %38 = arith.addf %35, %37 : vector<16x1xf32>
    %c0_25 = arith.constant 0 : index
    %c0_26 = arith.constant 0 : index
    %39 = vector.load %arg10[%c0_25, %c0_26] : memref<16x1xf32, #tpu.memory_space<vmem>>, vector<16x1xf32>
    tpu.vector_store %arg10[%c0_25, %c0_26], %38 {strides = array<i32>} : memref<16x1xf32, #tpu.memory_space<vmem>>, vector<16x1xf32>,
    %c0_27 = arith.constant 0 : index
    %c0_28 = arith.constant 0 : index
    %40 = vector.load %arg11[%c0_27, %c0_28] : memref<16x1xf32, #tpu.memory_space<vmem>>, vector<16x1xf32>
    %41 = arith.mulf %22, %40 : vector<16x1xf32>
    %cst_29 = arith.constant dense<0.000000e+00> : vector<16xf32>
    %42 = vector.multi_reduction <add>, %27, %cst_29 [1] : vector<16x32xf32> to vector<16xf32>
    %43 = vector.shape_cast %42 : vector<16xf32> to vector<16x1xf32>
    %44 = arith.addf %41, %43 : vector<16x1xf32>
    %c0_30 = arith.constant 0 : index
    %c0_31 = arith.constant 0 : index
    %45 = vector.load %arg11[%c0_30, %c0_31] : memref<16x1xf32, #tpu.memory_space<vmem>>, vector<16x1xf32>
    tpu.vector_store %arg11[%c0_30, %c0_31], %44 {strides = array<i32>} : memref<16x1xf32, #tpu.memory_space<vmem>>, vector<16x1xf32>,
    %c0_32 = arith.constant 0 : index
    %c0_33 = arith.constant 0 : index
    %46 = vector.load %arg8[%c0_32, %c0_33] : memref<16x1xf32, #tpu.memory_space<vmem>>, vector<16x1xf32>
    tpu.vector_store %arg8[%c0_32, %c0_33], %19 {strides = array<i32>} : memref<16x1xf32, #tpu.memory_space<vmem>>, vector<16x1xf32>,
    %c0_i32_34 = arith.constant 0 : i32
    %47 = arith.cmpi eq, %arg1, %c0_i32_34 : i32
    %48 = arith.extui %47 : i1 to i32
    %c0_i32_35 = arith.constant 0 : i32
    %49 = arith.cmpi ne, %48, %c0_i32_35 : i32
    scf.if %49 {
      %c0_36 = arith.constant 0 : index
      %c0_37 = arith.constant 0 : index
      %50 = vector.load %arg9[%c0_36, %c0_37] : memref<16x1xf32, #tpu.memory_space<vmem>>, vector<16x1xf32>
      %51 = tpu.reciprocal %50 : vector<16x1xf32> -> vector<16x1xf32>
      %c0_38 = arith.constant 0 : index
      %c0_39 = arith.constant 0 : index
      %52 = vector.load %arg10[%c0_38, %c0_39] : memref<16x1xf32, #tpu.memory_space<vmem>>, vector<16x1xf32>
      %53 = arith.mulf %52, %51 : vector<16x1xf32>
      %c0_40 = arith.constant 0 : index
      %c0_41 = arith.constant 0 : index
      %54 = vector.load %arg11[%c0_40, %c0_41] : memref<16x1xf32, #tpu.memory_space<vmem>>, vector<16x1xf32>
      %55 = arith.mulf %54, %51 : vector<16x1xf32>
      %56 = arith.mulf %53, %53 : vector<16x1xf32>
      %57 = arith.subf %55, %56 : vector<16x1xf32>
      %cst_42 = arith.constant 9.99999971E-10 : f32
      %58 = vector.broadcast %cst_42 : f32 to vector<16x1xf32>
      %59 = arith.maximumf %58, %57 : vector<16x1xf32>
      %60 = math.sqrt %59 : vector<16x1xf32>
      %cst_43 = arith.constant dense<0.000000e+00> : vector<16xf32>
      %61 = vector.multi_reduction <add>, %53, %cst_43 [1] : vector<16x1xf32> to vector<16xf32>
      %c0_44 = arith.constant 0 : index
      %c0_45 = arith.constant 0 : index
      %c0_46 = arith.constant 0 : index
      %62 = vector.load %arg7[%c0_44, %c0_45, %c0_46] : memref<1x2x16xf32, #tpu.memory_space<vmem>>, vector<1x1x16xf32>
      %63 = vector.shape_cast %62 : vector<1x1x16xf32> to vector<16xf32>
      %64 = vector.shape_cast %61 : vector<16xf32> to vector<1x1x16xf32>
      tpu.vector_store %arg7[%c0_44, %c0_45, %c0_46], %64 {strides = array<i32>} : memref<1x2x16xf32, #tpu.memory_space<vmem>>, vector<1x1x16xf32>,
      %cst_47 = arith.constant dense<0.000000e+00> : vector<16xf32>
      %65 = vector.multi_reduction <add>, %60, %cst_47 [1] : vector<16x1xf32> to vector<16xf32>
      %c0_48 = arith.constant 0 : index
      %c1 = arith.constant 1 : index
      %c0_49 = arith.constant 0 : index
      %66 = vector.load %arg7[%c0_48, %c1, %c0_49] : memref<1x2x16xf32, #tpu.memory_space<vmem>>, vector<1x1x16xf32>
      %67 = vector.shape_cast %66 : vector<1x1x16xf32> to vector<16xf32>
      %68 = vector.shape_cast %65 : vector<16xf32> to vector<1x1x16xf32>
      tpu.vector_store %arg7[%c0_48, %c1, %c0_49], %68 {strides = array<i32>} : memref<1x2x16xf32, #tpu.memory_space<vmem>>, vector<1x1x16xf32>,
    } else {
    }
    return
  }
  func.func @transform_0(%arg0: i32, %arg1: i32) -> (i32, i32, i32) {
    %c0_i32 = arith.constant 0 : i32
    %c0_i32_0 = arith.constant 0 : i32
    return %arg0, %c0_i32, %arg1 : i32, i32, i32
  }
  func.func @transform_1(%arg0: i32, %arg1: i32) -> (i32, i32) {
    %c0_i32 = arith.constant 0 : i32
    %c0_i32_0 = arith.constant 0 : i32
    %c0_i32_1 = arith.constant 0 : i32
    return %c0_i32, %c0_i32_0 : i32, i32
  }
  func.func @transform_2(%arg0: i32, %arg1: i32) -> (i32, i32) {
    %c0_i32 = arith.constant 0 : i32
    %c0_i32_0 = arith.constant 0 : i32
    %c0_i32_1 = arith.constant 0 : i32
    return %c0_i32, %c0_i32_0 : i32, i32
  }
  func.func @transform_3(%arg0: i32, %arg1: i32) -> (i32, i32) {
    %c0_i32 = arith.constant 0 : i32
    %c0_i32_0 = arith.constant 0 : i32
    %c0_i32_1 = arith.constant 0 : i32
    return %c0_i32, %c0_i32_0 : i32, i32
  }
  func.func @transform_4(%arg0: i32, %arg1: i32) -> (i32, i32) {
    %c0_i32 = arith.constant 0 : i32
    %c0_i32_0 = arith.constant 0 : i32
    %c0_i32_1 = arith.constant 0 : i32
    return %c0_i32, %c0_i32_0 : i32, i32
  }
  func.func @transform_5(%arg0: i32, %arg1: i32) -> (i32, i32, i32) {
    %c0_i32 = arith.constant 0 : i32
    %c0_i32_0 = arith.constant 0 : i32
    %c0_i32_1 = arith.constant 0 : i32
    return %arg0, %c0_i32, %c0_i32_0 : i32, i32, i32
  }
}

</mosaic_0001>

<llo_original>
// kernel: tpu_custom_call.1
$region0: #{tpu_custom_call.1}
  #allocation0 [shape = 'u32[]', space=smem, size = 0x4, offset = 0x4, fixed_abs, tag = 'smem constant byte address 0x4 - core index']
  #allocation1 [shape = 'u32[144,128]{1,0:T(1,128)}', space=vmem, size = 0x12000, scoped, tag = 'internal scratch']
  #allocation2 [shape = 'f32[16,1]{1,0:T(8,128)}', space=vmem, size = 0x2000, scoped, tag = 'scratch operand']
  #allocation3 [shape = 'f32[16,1]{1,0:T(8,128)}', space=vmem, size = 0x2000, scoped, tag = 'scratch operand']
  #allocation4 [shape = 'f32[16,1]{1,0:T(8,128)}', space=vmem, size = 0x2000, scoped, tag = 'scratch operand']
  #allocation5 [shape = 'f32[16,1]{1,0:T(8,128)}', space=vmem, size = 0x2000, scoped, tag = 'scratch operand']
  %s0 = inlined_call_operand.vmem [shape: f32[2,16,32], index: 0, kind: input, shape index: {}]
  %s1 = inlined_call_operand.vmem [shape: f32[8,16], index: 1, kind: input, shape index: {}]
  %s2 = inlined_call_operand.vmem [shape: f32[8,1], index: 2, kind: input, shape index: {}]
  %s3 = inlined_call_operand.vmem [shape: f32[16,8], index: 3, kind: input, shape index: {}]
  %s4 = inlined_call_operand.vmem [shape: f32[16,1], index: 4, kind: input, shape index: {}]
  %s5 = inlined_call_operand.hbm [shape: f32[2,2,16], index: 5, kind: output, shape index: {}]
  %s6 = sld [smem:[#allocation0]]
  $region61: #{tpu_custom_call.1} parent=0
    _
  %s8 = ssub.s32 1, %s6
  %s9 = scalar_select 0, %s8, %s6
  $region1: #{tpu_custom_call.1} parent=0
    #allocation6 [shape = 'u8[2048]{0}', space=vmem, size = 0x800, scoped, tag = 'output window, operand 0']
    #allocation7 [shape = 's32[2]{0}', space=sflag, size = 0x8, scoped, tag = 'scoped memory for tpu_custom_call.1']
    %10 = vsyncpa [#allocation7], 0
    %s11 = scalar_lea.sflag [#allocation7], 1
    %12 = vsyncpa %s11, 0
    loop: start=0, step=1, limit=4
    $region2: #{tpu_custom_call.1} parent=1 // loop_pre_header
      _
    $region3: #{tpu_custom_call.1} parent=1 // loop_header
      %s14 = sphi 0, %s18
      %p15 = scmp.ge.s32.totalorder %s14, 4
      %s21 = sphi 0, %s33
      %s22 = sphi 0, %s29
      %s23 = sphi 0, %s21
      %s24 = sphi 0, %s22
      %s25 = sphi 0, %s23
      %s26 = sphi 0, %s24
      %s38 = sphi 0, %s40
      %s41 = sphi 0, %s38
      %s42 = sphi 0, %s41
      %s58 = sphi 0, %s42
      %s62 = sphi 0, %s62
      %s64 = sphi 0, %s62
      %s65 = sphi 0, %s64
      %s79 = sphi 0, %s65
      %s83 = sphi 0, %s83
      %s85 = sphi 0, %s83
      %s86 = sphi 0, %s85
      %s100 = sphi 0, %s86
      %s104 = sphi 0, %s104
      %s106 = sphi 0, %s104
      %s107 = sphi 0, %s106
      %s121 = sphi 0, %s107
      %s125 = sphi 0, %s125
      %s127 = sphi 0, %s125
      %s128 = sphi 0, %s127
      %s142 = sphi 0, %s128
      %s148 = sphi 0, %s150
      %s151 = sphi 0, %s148
      %s152 = sphi 0, %s151
      %s168 = sphi 0, %s152
    $region4: #{tpu_custom_call.1} parent=1 // loop_header_branch
      %17 = sbr.rel (%p15) target = $region8
    $region5: #{tpu_custom_call.1} parent=1 // loop_body
      %s19 = ssub.s32 %s14, 1
      %s20 = ssub.s32 %s14, 2
      %s27 = sadd.s32 1, %s22
      %p28 = scmp.ge.s32.totalorder %s27, 1
      %s29 = scalar_select %p28, 0, %s27
      %s30 = sadd.s32 1, %s21
      %s31 = scalar_select %p28, %s30, %s21
      %p32 = scmp.ge.s32.totalorder %s31, 2
      %s33 = scalar_select %p32, 0, %s31
      %s34 = ssub.s32 %s21, %s33
      %s35 = ssub.s32 %s22, %s29
      %s36 = sor.u32 %s34, %s35
      %p37 = scmp.eq.s32.totalorder %s36, 0
      %s39 = sadd.s32 %s38, 1
      %s40 = scalar_select %p37, %s38, %s39
      %p43 = pneg %p37
      %p44 = scmp.eq.s32.totalorder %s14, 1
      %p45 = por %p43, %p44
      %p46 = scmp.ne.s32.totalorder %s38, %s41
      %p47 = scmp.eq.s32.totalorder %s14, 0
      %p48 = por %p46, %p47
      %p49 = scmp.ne.s32.totalorder %s38, %s41
      %p50 = scmp.eq.s32.totalorder %s19, 1
      %p51 = por %p49, %p50
      %p52 = scmp.ne.s32.totalorder %s41, %s42
      %p53 = scmp.eq.s32.totalorder %s19, 0
      %p54 = por %p52, %p53
      %p55 = scmp.ne.s32.totalorder %s41, %s42
      %p56 = scmp.eq.s32.totalorder %s20, 1
      %p57 = por %p55, %p56
      %p59 = scmp.ne.s32.totalorder %s42, %s58
      %p60 = scmp.eq.s32.totalorder %s20, 0
      %p61 = por %p59, %p60
      %s63 = sadd.s32 %s62, 1
      %p66 = scmp.eq.s32.totalorder %s14, 1
      %p67 = scmp.ne.s32.totalorder %s62, %s64
      %p68 = scmp.eq.s32.totalorder %s14, 0
      %p69 = por %p67, %p68
      %p70 = scmp.ne.s32.totalorder %s62, %s64
      %p71 = scmp.eq.s32.totalorder %s19, 1
      %p72 = por %p70, %p71
      %p73 = scmp.ne.s32.totalorder %s64, %s65
      %p74 = scmp.eq.s32.totalorder %s19, 0
      %p75 = por %p73, %p74
      %p76 = scmp.ne.s32.totalorder %s64, %s65
      %p77 = scmp.eq.s32.totalorder %s20, 1
      %p78 = por %p76, %p77
      %p80 = scmp.ne.s32.totalorder %s65, %s79
      %p81 = scmp.eq.s32.totalorder %s20, 0
      %p82 = por %p80, %p81
      %s84 = sadd.s32 %s83, 1
      %p87 = scmp.eq.s32.totalorder %s14, 1
      %p88 = scmp.ne.s32.totalorder %s83, %s85
      %p89 = scmp.eq.s32.totalorder %s14, 0
      %p90 = por %p88, %p89
      %p91 = scmp.ne.s32.totalorder %s83, %s85
      %p92 = scmp.eq.s32.totalorder %s19, 1
      %p93 = por %p91, %p92
      %p94 = scmp.ne.s32.totalorder %s85, %s86
      %p95 = scmp.eq.s32.totalorder %s19, 0
      %p96 = por %p94, %p95
      %p97 = scmp.ne.s32.totalorder %s85, %s86
      %p98 = scmp.eq.s32.totalorder %s20, 1
      %p99 = por %p97, %p98
      %p101 = scmp.ne.s32.totalorder %s86, %s100
      %p102 = scmp.eq.s32.totalorder %s20, 0
      %p103 = por %p101, %p102
      %s105 = sadd.s32 %s104, 1
      %p108 = scmp.eq.s32.totalorder %s14, 1
      %p109 = scmp.ne.s32.totalorder %s104, %s106
      %p110 = scmp.eq.s32.totalorder %s14, 0
      %p111 = por %p109, %p110
      %p112 = scmp.ne.s32.totalorder %s104, %s106
      %p113 = scmp.eq.s32.totalorder %s19, 1
      %p114 = por %p112, %p113
      %p115 = scmp.ne.s32.totalorder %s106, %s107
      %p116 = scmp.eq.s32.totalorder %s19, 0
      %p117 = por %p115, %p116
      %p118 = scmp.ne.s32.totalorder %s106, %s107
      %p119 = scmp.eq.s32.totalorder %s20, 1
      %p120 = por %p118, %p119
      %p122 = scmp.ne.s32.totalorder %s107, %s121
      %p123 = scmp.eq.s32.totalorder %s20, 0
      %p124 = por %p122, %p123
      %s126 = sadd.s32 %s125, 1
      %p129 = scmp.eq.s32.totalorder %s14, 1
      %p130 = scmp.ne.s32.totalorder %s125, %s127
      %p131 = scmp.eq.s32.totalorder %s14, 0
      %p132 = por %p130, %p131
      %p133 = scmp.ne.s32.totalorder %s125, %s127
      %p134 = scmp.eq.s32.totalorder %s19, 1
      %p135 = por %p133, %p134
      %p136 = scmp.ne.s32.totalorder %s127, %s128
      %p137 = scmp.eq.s32.totalorder %s19, 0
      %p138 = por %p136, %p137
      %p139 = scmp.ne.s32.totalorder %s127, %s128
      %p140 = scmp.eq.s32.totalorder %s20, 1
      %p141 = por %p139, %p140
      %p143 = scmp.ne.s32.totalorder %s128, %s142
      %p144 = scmp.eq.s32.totalorder %s20, 0
      %p145 = por %p143, %p144
      %s146 = ssub.s32 %s21, %s33
      %p147 = scmp.eq.s32.totalorder %s146, 0
      %s149 = sadd.s32 %s148, 1
      %s150 = scalar_select %p147, %s148, %s149
      %p153 = pneg %p147
      %p154 = scmp.eq.s32.totalorder %s14, 1
      %p155 = por %p153, %p154
      %p156 = scmp.ne.s32.totalorder %s148, %s151
      %p157 = scmp.eq.s32.totalorder %s14, 0
      %p158 = por %p156, %p157
      %p159 = scmp.ne.s32.totalorder %s148, %s151
      %p160 = scmp.eq.s32.totalorder %s19, 1
      %p161 = por %p159, %p160
      %p162 = scmp.ne.s32.totalorder %s151, %s152
      %p163 = scmp.eq.s32.totalorder %s19, 0
      %p164 = por %p162, %p163
      %p165 = scmp.ne.s32.totalorder %s151, %s152
      %p166 = scmp.eq.s32.totalorder %s20, 1
      %p167 = por %p165, %p166
      %p169 = scmp.ne.s32.totalorder %s152, %s168
      %p170 = scmp.eq.s32.totalorder %s20, 0
      %p171 = por %p169, %p170
      %p172 = scmp.le.s32.totalorder 1, %s14
      %p173 = scmp.lt.s32.totalorder %s14, 3
      %p174 = pnand %p172, %p173
      %p175 = pneg %p174
      // Predicated region
      $region9: #{tpu_custom_call.1} parent=5 // pred_check
        _
      $region10: #{tpu_custom_call.1} parent=5 // pred_check_branch
        %177 = sbr.rel (%p174) target = $region12
      $region11: #{tpu_custom_call.1} parent=5 // pred_region
        %s178 = ssub.s32 %s14, 1
        // Predicated region
        $region13: #{tpu_custom_call.1} parent=11 // pred_check
          %p179 = pneg %p75
        $region14: #{tpu_custom_call.1} parent=11 // pred_check_branch
          %181 = sbr.rel (%p179) target = $region16
        $region15: #{tpu_custom_call.1} parent=11 // pred_region
          _
        $region16: #{tpu_custom_call.1} parent=11 // pred_fallthru
          _
        // Predicated region
        $region17: #{tpu_custom_call.1} parent=11 // pred_check
          %p182 = pneg %p96
        $region18: #{tpu_custom_call.1} parent=11 // pred_check_branch
          %184 = sbr.rel (%p182) target = $region20
        $region19: #{tpu_custom_call.1} parent=11 // pred_region
          _
        $region20: #{tpu_custom_call.1} parent=11 // pred_fallthru
          _
        // Predicated region
        $region21: #{tpu_custom_call.1} parent=11 // pred_check
          %p185 = pneg %p117
        $region22: #{tpu_custom_call.1} parent=11 // pred_check_branch
          %187 = sbr.rel (%p185) target = $region24
        $region23: #{tpu_custom_call.1} parent=11 // pred_region
          _
        $region24: #{tpu_custom_call.1} parent=11 // pred_fallthru
          _
        // Predicated region
        $region25: #{tpu_custom_call.1} parent=11 // pred_check
          %p188 = pneg %p138
        $region26: #{tpu_custom_call.1} parent=11 // pred_check_branch
          %190 = sbr.rel (%p188) target = $region28
        $region27: #{tpu_custom_call.1} parent=11 // pred_region
          _
        $region28: #{tpu_custom_call.1} parent=11 // pred_fallthru
          _
      $region12: #{tpu_custom_call.1} parent=5 // pred_fallthru
        _
      %p191 = scmp.lt.s32.totalorder %s14, 2
      // Predicated region
      $region29: #{tpu_custom_call.1} parent=5 // pred_check
        %p192 = pneg %p191
      $region30: #{tpu_custom_call.1} parent=5 // pred_check_branch
        %194 = sbr.rel (%p192) target = $region32
      $region31: #{tpu_custom_call.1} parent=5 // pred_region
        // Predicated region
        $region33: #{tpu_custom_call.1} parent=31 // pred_check
          %p195 = pneg %p48
        $region34: #{tpu_custom_call.1} parent=31 // pred_check_branch
          %197 = sbr.rel (%p195) target = $region36
        $region35: #{tpu_custom_call.1} parent=31 // pred_region
          %p198 = scmp.lt.s32.totalorder %s21, 1
          %s199 = scalar_select %p198, %s21, 1
          %p200 = scmp.lt.s32.totalorder %s22, 0
          %s201 = scalar_select %p200, %s22, 0
          %s202 = smul.addr %s199, 2
          %s203 = sadd.s32 %s201, %s202
          %s204 = smul.addr %s203, 8
          %s205 = scalar_lea.vmem %s0, %s204
        $region36: #{tpu_custom_call.1} parent=31 // pred_fallthru
          _
      $region32: #{tpu_custom_call.1} parent=5 // pred_fallthru
        _
      %p206 = scmp.le.s32.totalorder 1, %s14
      %p207 = scmp.lt.s32.totalorder %s14, 3
      %p208 = pnand %p206, %p207
      %p209 = pneg %p208
      // Predicated region
      $region37: #{tpu_custom_call.1} parent=5 // pred_check
        _
      $region38: #{tpu_custom_call.1} parent=5 // pred_check_branch
        %211 = sbr.rel (%p208) target = $region40
      $region39: #{tpu_custom_call.1} parent=5 // pred_region
        %s212 = ssub.s32 %s14, 1
        %p213 = scmp.lt.s32.totalorder %s23, 1
        %s214 = scalar_select %p213, %s23, 1
        %p215 = scmp.lt.s32.totalorder %s24, 0
        %s216 = scalar_select %p215, %s24, 0
        %s217 = smul.addr %s214, 2
        %s218 = sadd.s32 %s216, %s217
        %s219 = smul.addr %s218, 8
        %s220 = scalar_lea.vmem %s0, %s219
        %p221 = pneg %p54
        %p222 = pneg %p51
        %p223 = pneg %p75
        %p224 = pneg %p72
        %p225 = pneg %p96
        %p226 = pneg %p93
        %p227 = pneg %p117
        %p228 = pneg %p114
        %p229 = pneg %p138
        %p230 = pneg %p135
        %p231 = pneg %p164
        %p232 = pneg %p161
        %s233 = sand.u32 %s151, 1
        %s234 = scalar_lea.sflag [#allocation7], %s233
        %s235 = sand.u32 %s151, 1
        %s236 = smul.addr %s235, 2
        %s237 = scalar_lea.vmem [#allocation6], %s236
        %p238 = scmp.lt.s32.totalorder %s23, 1
        %s239 = scalar_select %p238, %s23, 1
        %p240 = scmp.lt.s32.totalorder %s24, 0
        %s241 = scalar_select %p240, %s24, 0
        %s242 = smul.addr %s239, 2
        %s243 = sadd.s32 %s241, %s242
        %s244 = smul.addr %s243, 8
        %s245 = scalar_lea.vmem %s0, %s244
        %p246 = scmp.eq.s32.totalorder %s24, 0
        // Predicated region
        $region41: #{tpu_custom_call.1} parent=39 // pred_check
          %p247 = pneg %p246
        $region42: #{tpu_custom_call.1} parent=39 // pred_check_branch
          %249 = sbr.rel (%p247) target = $region44
        $region43: #{tpu_custom_call.1} parent=39 // pred_region
          %vm250 = vcmask 7168
          %251 = vst.msk [vmem:[#allocation2] sm:$0xff] %vm250, -inf
          %252 = vst.msk [vmem:[#allocation2 + $0x8] sm:$0xff] %vm250, -inf
          %253 = vst.msk [vmem:[#allocation3] sm:$0xff] %vm250, 0.0
          %254 = vst.msk [vmem:[#allocation3 + $0x8] sm:$0xff] %vm250, 0.0
          %255 = vst.msk [vmem:[#allocation4] sm:$0xff] %vm250, 0.0
          %256 = vst.msk [vmem:[#allocation4 + $0x8] sm:$0xff] %vm250, 0.0
          %257 = vst.msk [vmem:[#allocation5] sm:$0xff] %vm250, 0.0
          %258 = vst.msk [vmem:[#allocation5 + $0x8] sm:$0xff] %vm250, 0.0
        $region44: #{tpu_custom_call.1} parent=39 // pred_fallthru
          _
        %v259 = vld [vmem:[%s245] sm:$0xff]
        %v260 = vld [vmem:[%s245 + $0x8] sm:$0xff]
        %v261 = vld [vmem:[%s1] sm:$0xff]
        %v262 = vld [vmem:[%s2] sm:$0xff]
        %264 = vset.pattern.permute.xlu0 0
        %265 = vperm.xlu0 %264, %v262
        %v266 = vpop.permute.xlu0 %265
        %vm268 = vcmask 130048
        %v270 = vsel %vm268, %v261, 0
        %272 = vmatprep.subr.mxu0 0.0
        %273 = vmatpush1.msra.mxu0 %v259
        %274 = vmatprep.subr.mxu0 0.0
        %275 = vmatpush1.msra.mxu0 %v260
        %276 = vmatprep.subr.mxu0 0.0
        %277 = vmatpush1.msra.mxu0 0.0
        %278 = vmatprep.subr.mxu0 0.0
        %279 = vmatpush1.msra.mxu0 0.0
        %280 = vmatprep.subr.mxu0 0.0
        %281 = vmatpush1.msra.mxu0 0.0
        %282 = vmatprep.subr.mxu0 0.0
        %283 = vmatpush1.msra.mxu0 0.0
        %284 = vmatprep.subr.mxu0 0.0
        %285 = vmatpush1.msra.mxu0 0.0
        %286 = vmatprep.subr.mxu0 0.0
        %287 = vmatpush1.msra.mxu0 0.0
        %288 = vmatprep.subr.mxu0 0.0
        %289 = vmatpush1.msra.mxu0 0.0
        %290 = vmatprep.subr.mxu0 0.0
        %291 = vmatpush1.msra.mxu0 0.0
        %292 = vmatprep.subr.mxu0 0.0
        %293 = vmatpush1.msra.mxu0 0.0
        %294 = vmatprep.subr.mxu0 0.0
        %295 = vmatpush1.msra.mxu0 0.0
        %296 = vmatprep.subr.mxu0 0.0
        %297 = vmatpush1.msra.mxu0 0.0
        %298 = vmatprep.subr.mxu0 0.0
        %299 = vmatpush1.msra.mxu0 0.0
        %300 = vmatprep.subr.mxu0 0.0
        %301 = vmatpush1.msra.mxu0 0.0
        %302 = vmatprep.subr.mxu0 0.0
        %303 = vmatpush1.msra.mxu0 0.0
        %304 = vmatprep.subr.mxu0 0.0
        %305 = vmatpush1.msra.mxu0 0.0
        %306 = vmatprep.subr.mxu0 0.0
        %307 = vmatpush1.msra.mxu0 0.0
        %308 = vmatprep.subr.mxu0 0.0
        %309 = vmatpush1.msra.mxu0 0.0
        %310 = vmatprep.subr.mxu0 0.0
        %311 = vmatpush1.msra.mxu0 0.0
        %312 = vmatprep.subr.mxu0 0.0
        %313 = vmatpush1.msra.mxu0 0.0
        %314 = vmatprep.subr.mxu0 0.0
        %315 = vmatpush1.msra.mxu0 0.0
        %316 = vmatprep.subr.mxu0 0.0
        %317 = vmatpush1.msra.mxu0 0.0
        %318 = vmatprep.subr.mxu0 0.0
        %319 = vmatpush1.msra.mxu0 0.0
        %320 = vmatprep.subr.mxu0 0.0
        %321 = vmatpush1.msra.mxu0 0.0
        %322 = vmatprep.subr.mxu0 0.0
        %323 = vmatpush1.msra.mxu0 0.0
        %324 = vmatprep.subr.mxu0 0.0
        %325 = vmatpush1.msra.mxu0 0.0
        %326 = vmatprep.subr.mxu0 0.0
        %327 = vmatpush1.msra.mxu0 0.0
        %328 = vmatprep.subr.mxu0 0.0
        %329 = vmatpush1.msra.mxu0 0.0
        %330 = vmatprep.subr.mxu0 0.0
        %331 = vmatpush1.msra.mxu0 0.0
        %332 = vmatprep.subr.mxu0 0.0
        %333 = vmatpush1.msra.mxu0 0.0
        %334 = vmatprep.subr.mxu0 0.0
        %335 = vmatpush1.msra.mxu0 0.0
        %336 = vmatprep.mubr.f32.mxu0 0.0
        %337 = vmatmul.mubr.f32.gmra.mrb[0].mxu0 %v270
        %v338 = vpop.f32.mrb[0].mxu0
        %v339 = vadd.f32 %v266, %v338
        %v340 = vpop.f32.mrb[0].mxu0
        %341 = vdwg.mxu0
        %v342 = vtanh.pop %v339
        %v343 = vld [vmem:[%s3] sm:$0xff]
        %v344 = vld [vmem:[%s3 + $0x8] sm:$0xff]
        %v345 = vld [vmem:[%s4] sm:$0xff]
        %v346 = vld [vmem:[%s4 + $0x8] sm:$0xff]
        %348 = vset.pattern.permute.xlu0 0
        %349 = vperm.xlu0 %348, %v345
        %v350 = vpop.permute.xlu0 %349
        %353 = vset.pattern.permute.xlu0 0
        %354 = vperm.xlu0 %353, %v346
        %v355 = vpop.permute.xlu0 %354
        %vm357 = vcmask 64512
        %v359 = vsel %vm357, %v343, 0
        %v362 = vsel %vm357, %v344, 0
        %364 = vmatprep.subr.mxu0 0.0
        %365 = vmatpush1.msra.mxu0 %v342
        %366 = vmatprep.subr.mxu0 0.0
        %367 = vmatpush1.msra.mxu0 0.0
        %368 = vmatprep.subr.mxu0 0.0
        %369 = vmatpush1.msra.mxu0 0.0
        %370 = vmatprep.subr.mxu0 0.0
        %371 = vmatpush1.msra.mxu0 0.0
        %372 = vmatprep.subr.mxu0 0.0
        %373 = vmatpush1.msra.mxu0 0.0
        %374 = vmatprep.subr.mxu0 0.0
        %375 = vmatpush1.msra.mxu0 0.0
        %376 = vmatprep.subr.mxu0 0.0
        %377 = vmatpush1.msra.mxu0 0.0
        %378 = vmatprep.subr.mxu0 0.0
        %379 = vmatpush1.msra.mxu0 0.0
        %380 = vmatprep.subr.mxu0 0.0
        %381 = vmatpush1.msra.mxu0 0.0
        %382 = vmatprep.subr.mxu0 0.0
        %383 = vmatpush1.msra.mxu0 0.0
        %384 = vmatprep.subr.mxu0 0.0
        %385 = vmatpush1.msra.mxu0 0.0
        %386 = vmatprep.subr.mxu0 0.0
        %387 = vmatpush1.msra.mxu0 0.0
        %388 = vmatprep.subr.mxu0 0.0
        %389 = vmatpush1.msra.mxu0 0.0
        %390 = vmatprep.subr.mxu0 0.0
        %391 = vmatpush1.msra.mxu0 0.0
        %392 = vmatprep.subr.mxu0 0.0
        %393 = vmatpush1.msra.mxu0 0.0
        %394 = vmatprep.subr.mxu0 0.0
        %395 = vmatpush1.msra.mxu0 0.0
        %396 = vmatprep.subr.mxu0 0.0
        %397 = vmatpush1.msra.mxu0 0.0
        %398 = vmatprep.subr.mxu0 0.0
        %399 = vmatpush1.msra.mxu0 0.0
        %400 = vmatprep.subr.mxu0 0.0
        %401 = vmatpush1.msra.mxu0 0.0
        %402 = vmatprep.subr.mxu0 0.0
        %403 = vmatpush1.msra.mxu0 0.0
        %404 = vmatprep.subr.mxu0 0.0
        %405 = vmatpush1.msra.mxu0 0.0
        %406 = vmatprep.subr.mxu0 0.0
        %407 = vmatpush1.msra.mxu0 0.0
        %408 = vmatprep.subr.mxu0 0.0
        %409 = vmatpush1.msra.mxu0 0.0
        %410 = vmatprep.subr.mxu0 0.0
        %411 = vmatpush1.msra.mxu0 0.0
        %412 = vmatprep.subr.mxu0 0.0
        %413 = vmatpush1.msra.mxu0 0.0
        %414 = vmatprep.subr.mxu0 0.0
        %415 = vmatpush1.msra.mxu0 0.0
        %416 = vmatprep.subr.mxu0 0.0
        %417 = vmatpush1.msra.mxu0 0.0
        %418 = vmatprep.subr.mxu0 0.0
        %419 = vmatpush1.msra.mxu0 0.0
        %420 = vmatprep.subr.mxu0 0.0
        %421 = vmatpush1.msra.mxu0 0.0
        %422 = vmatprep.subr.mxu0 0.0
        %423 = vmatpush1.msra.mxu0 0.0
        %424 = vmatprep.subr.mxu0 0.0
        %425 = vmatpush1.msra.mxu0 0.0
        %426 = vmatprep.subr.mxu0 0.0
        %427 = vmatpush1.msra.mxu0 0.0
        %428 = vmatprep.mubr.f32.mxu0 0.0
        %429 = vmatmul.mubr.f32.gmra.mrb[0].mxu0 %v359
        %v430 = vpop.f32.mrb[0].mxu0
        %v431 = vadd.f32 %v350, %v430
        %v432 = vpop.f32.mrb[0].mxu0
        %433 = vmatprep.mubr.f32.mxu0 0.0
        %434 = vmatmul.mubr.f32.gmra.mrb[0].mxu0 %v362
        %v435 = vpop.f32.mrb[0].mxu0
        %v436 = vadd.f32 %v355, %v435
        %v437 = vpop.f32.mrb[0].mxu0
        %438 = vdwg.mxu0
        %vm439 = vcmask 261120
        %v440 = vsel %vm439, %v431, -inf
        %441 = vmax.xlane.f32.xlu0 %v440
        %v442 = vpop.xlane.xlu0 %441
        %v443 = vsel %vm439, %v436, -inf
        %444 = vmax.xlane.f32.xlu0 %v443
        %v445 = vpop.xlane.xlu0 %444
        %v446 = vld [vmem:[#allocation2] sm:$0xff]
        %v447 = vld [vmem:[#allocation2 + $0x8] sm:$0xff]
        %v448 = vmax.f32 %v446, %v442
        %v449 = vmax.f32 %v447, %v445
        %v450 = vsub.f32 %v446, %v448
        %v451 = vsub.f32 %v447, %v449
        %v452 = vmul.f32 %v450, 1.442695
        %v453 = vpow.pop %v452
        %v454 = vmul.f32 %v451, 1.442695
        %v455 = vpow.pop %v454
        %457 = vset.pattern.permute.xlu0 0
        %458 = vperm.xlu0 %457, %v448
        %v459 = vpop.permute.xlu0 %458
        %462 = vset.pattern.permute.xlu0 0
        %463 = vperm.xlu0 %462, %v449
        %v464 = vpop.permute.xlu0 %463
        %v466 = vsub.f32 %v431, %v459
        %v467 = vsub.f32 %v436, %v464
        %v468 = vmul.f32 %v466, 1.442695
        %v469 = vpow.pop %v468
        %v470 = vmul.f32 %v467, 1.442695
        %v471 = vpow.pop %v470
        %v472 = vmul.f32 %v469, %v259
        %v473 = vmul.f32 %v471, %v260
        %v474 = vmul.f32 %v472, %v259
        %v475 = vmul.f32 %v473, %v260
        %v476 = vld [vmem:[#allocation3] sm:$0xff]
        %v477 = vld [vmem:[#allocation3 + $0x8] sm:$0xff]
        %v478 = vmul.f32 %v453, %v476
        %v479 = vmul.f32 %v455, %v477
        %v480 = vsel %vm439, %v469, 0.0
        %481 = vadd.xlane.f32.xlu0 %v480
        %v482 = vpop.xlane.xlu0 %481
        %v483 = vsel %vm439, %v471, 0.0
        %484 = vadd.xlane.f32.xlu0 %v483
        %v485 = vpop.xlane.xlu0 %484
        %v486 = vadd.f32 %v478, %v482
        %v487 = vadd.f32 %v479, %v485
        %vm488 = vcmask 7168
        %489 = vst.msk [vmem:[#allocation3] sm:$0xff] %vm488, %v486
        %490 = vst.msk [vmem:[#allocation3 + $0x8] sm:$0xff] %vm488, %v487
        %v491 = vld [vmem:[#allocation4] sm:$0xff]
        %v492 = vld [vmem:[#allocation4 + $0x8] sm:$0xff]
        %v493 = vmul.f32 %v453, %v491
        %v494 = vmul.f32 %v455, %v492
        %v495 = vsel %vm439, %v472, 0.0
        %496 = vadd.xlane.f32.xlu0 %v495
        %v497 = vpop.xlane.xlu0 %496
        %v498 = vsel %vm439, %v473, 0.0
        %499 = vadd.xlane.f32.xlu0 %v498
        %v500 = vpop.xlane.xlu0 %499
        %v501 = vadd.f32 %v493, %v497
        %v502 = vadd.f32 %v494, %v500
        %503 = vst.msk [vmem:[#allocation4] sm:$0xff] %vm488, %v501
        %504 = vst.msk [vmem:[#allocation4 + $0x8] sm:$0xff] %vm488, %v502
        %v505 = vld [vmem:[#allocation5] sm:$0xff]
        %v506 = vld [vmem:[#allocation5 + $0x8] sm:$0xff]
        %v507 = vmul.f32 %v453, %v505
        %v508 = vmul.f32 %v455, %v506
        %v509 = vsel %vm439, %v474, 0.0
        %510 = vadd.xlane.f32.xlu0 %v509
        %v511 = vpop.xlane.xlu0 %510
        %v512 = vsel %vm439, %v475, 0.0
        %513 = vadd.xlane.f32.xlu0 %v512
        %v514 = vpop.xlane.xlu0 %513
        %v515 = vadd.f32 %v507, %v511
        %v516 = vadd.f32 %v508, %v514
        %517 = vst.msk [vmem:[#allocation5] sm:$0xff] %vm488, %v515
        %518 = vst.msk [vmem:[#allocation5 + $0x8] sm:$0xff] %vm488, %v516
        %519 = vst.msk [vmem:[#allocation2] sm:$0xff] %vm488, %v448
        %520 = vst.msk [vmem:[#allocation2 + $0x8] sm:$0xff] %vm488, %v449
        // Predicated region
        $region45: #{tpu_custom_call.1} parent=39 // pred_check
          %p521 = pneg %p246
        $region46: #{tpu_custom_call.1} parent=39 // pred_check_branch
          %523 = sbr.rel (%p521) target = $region48
        $region47: #{tpu_custom_call.1} parent=39 // pred_region
          %v524 = vld [vmem:[#allocation3] sm:$0xff]
          %v525 = vld [vmem:[#allocation3 + $0x8] sm:$0xff]
          %v526 = vrcp.pop %v524
          %v527 = vrcp.pop %v525
          %v528 = vld [vmem:[#allocation4] sm:$0xff]
          %v529 = vld [vmem:[#allocation4 + $0x8] sm:$0xff]
          %v530 = vmul.f32 %v528, %v526
          %v531 = vmul.f32 %v529, %v527
          %v532 = vld [vmem:[#allocation5] sm:$0xff]
          %v533 = vld [vmem:[#allocation5 + $0x8] sm:$0xff]
          %v534 = vmul.f32 %v532, %v526
          %v535 = vmul.f32 %v533, %v527
          %v536 = vmul.f32 %v530, %v530
          %v537 = vmul.f32 %v531, %v531
          %v538 = vsub.f32 %v534, %v536
          %v539 = vsub.f32 %v535, %v537
          %v540 = vmax.f32 %v538, 1e-09
          %v541 = vmax.f32 %v539, 1e-09
          %v542 = vrsqrt.pop %v540
          %v543 = vmul.f32 %v540, %v542
          %vm544 = vcmp.eq.f32.partialorder %v540, inf
          %v545 = vsel %vm544, %v540, %v543
          %vm546 = vcmp.eq.f32.partialorder %v540, 0.0
          %v547 = vand.u32 %v540, 2147483648
          %v548 = vsel %vm546, %v547, %v545
          %v549 = vrsqrt.pop %v541
          %v550 = vmul.f32 %v541, %v549
          %vm551 = vcmp.eq.f32.partialorder %v541, inf
          %v552 = vsel %vm551, %v541, %v550
          %vm553 = vcmp.eq.f32.partialorder %v541, 0.0
          %v554 = vand.u32 %v541, 2147483648
          %v555 = vsel %vm553, %v554, %v552
          %v556 = vadd.f32 %v530, 0.0
          %v557 = vadd.f32 %v531, 0.0
          %560 = vset.pattern.permute.xlu0 0
          %561 = vperm.xlu0 %560, %v556
          %v562 = vpop.permute.xlu0 %561
          %563 = vset.pattern.permute.xlu0 0
          %564 = vperm.xlu0 %563, %v557
          %v565 = vpop.permute.xlu0 %564
          %v566 = vlaneseq
          %v567 = vand.u32 %v566, 127
          %v568 = vlaneseq
          %v569 = vshrl.u32 %v568, 7
          %v570 = vsub.s32 %v567, %v569
          %v571 = vrot.slane %v562, %v570
          %v572 = vadd.s32 %v567, 4294967288
          %v573 = vlaneseq
          %v574 = vshrl.u32 %v573, 7
          %v575 = vsub.s32 %v572, %v574
          %v576 = vrot.slane %v565, %v575
          %vm577 = vcmask 130112
          %v578 = vsel %vm577, %v576, %v571
          %vm580 = vcmask 122880
          %581 = vst.msk [vmem:[%s237] sm:$0x1] %vm580, %v578
          %v582 = vadd.f32 %v548, 0.0
          %v583 = vadd.f32 %v555, 0.0
          %586 = vset.pattern.permute.xlu0 0
          %587 = vperm.xlu0 %586, %v582
          %v588 = vpop.permute.xlu0 %587
          %589 = vset.pattern.permute.xlu0 0
          %590 = vperm.xlu0 %589, %v583
          %v591 = vpop.permute.xlu0 %590
          %v592 = vlaneseq
          %v593 = vshrl.u32 %v592, 7
          %v594 = vsub.s32 %v567, %v593
          %v595 = vrot.slane %v588, %v594
          %v596 = vlaneseq
          %v597 = vshrl.u32 %v596, 7
          %v598 = vsub.s32 %v572, %v597
          %v599 = vrot.slane %v591, %v598
          %v600 = vsel %vm577, %v599, %v595
          %602 = vst.msk [vmem:[%s237 + $0x1] sm:$0x1] %vm580, %v600
        $region48: #{tpu_custom_call.1} parent=39 // pred_fallthru
          _
        %s603 = sand.u32 %s151, 1
        %s604 = scalar_lea.sflag [#allocation7], %s603
        %s605 = sand.u32 %s151, 1
        %s606 = smul.addr %s605, 2
        %s607 = scalar_lea.vmem [#allocation6], %s606
        // Predicated region
        $region49: #{tpu_custom_call.1} parent=39 // pred_check
          %p608 = pneg %p161
        $region50: #{tpu_custom_call.1} parent=39 // pred_check_branch
          %610 = sbr.rel (%p608) target = $region52
        $region51: #{tpu_custom_call.1} parent=39 // pred_region
          %s612 = ssub.s32 32, 32
          %613 = vsyncadd %s604, %s612
          %s614 = smul.addr %s23, 32
          %s615 = scalar_lea.hbm %s5, %s614
          %s617 = sshll.u32 %s607, 4
          %s618 = int_to_ptr.vmem [resolvable:$true] %s617
          %620 = dma.vmem_to_hbm [thread:$0]  %s618, 32, %s615, %s604
        $region52: #{tpu_custom_call.1} parent=39 // pred_fallthru
          _
      $region40: #{tpu_custom_call.1} parent=5 // pred_fallthru
        _
      %p621 = scmp.le.s32.totalorder 2, %s14
      // Predicated region
      $region53: #{tpu_custom_call.1} parent=5 // pred_check
        %p622 = pneg %p621
      $region54: #{tpu_custom_call.1} parent=5 // pred_check_branch
        %624 = sbr.rel (%p622) target = $region56
      $region55: #{tpu_custom_call.1} parent=5 // pred_region
        %s625 = ssub.s32 %s14, 2
        // Predicated region
        $region57: #{tpu_custom_call.1} parent=55 // pred_check
          %p626 = pneg %p167
        $region58: #{tpu_custom_call.1} parent=55 // pred_check_branch
          %628 = sbr.rel (%p626) target = $region60
        $region59: #{tpu_custom_call.1} parent=55 // pred_region
          %s629 = sand.u32 %s152, 1
          %s630 = scalar_lea.sflag [#allocation7], %s629
          %s631 = sand.u32 %s152, 1
          %s632 = smul.addr %s631, 2
          %s633 = scalar_lea.vmem [#allocation6], %s632
          %634 = dma.done %s630, 32
        $region60: #{tpu_custom_call.1} parent=55 // pred_fallthru
          _
      $region56: #{tpu_custom_call.1} parent=5 // pred_fallthru
        _
    $region6: #{tpu_custom_call.1} parent=1 // loop_footer
      %s18 = sadd.s32 1, %s14
    $region7: #{tpu_custom_call.1} parent=1 // loop_footer_branch
      %13 = sbr.rel target = $region3
    $region8: #{tpu_custom_call.1} parent=1 // loop_exit
      _
    %635 = vsyncpa [#allocation7], 1
    %s636 = scalar_lea.sflag [#allocation7], 1
    %637 = vsyncpa %s636, 1

// kernel: tpu_custom_call.1
$region0: #{tpu_custom_call.1}
  #allocation0 [shape = 'u32[]', space=smem, size = 0x4, offset = 0x4, fixed_abs, tag = 'smem constant byte address 0x4 - core index']
  #allocation1 [shape = 'u32[144,128]{1,0:T(1,128)}', space=vmem, size = 0x12000, scoped, tag = 'internal scratch']
  #allocation2 [shape = 'f32[16,1]{1,0:T(8,128)}', space=vmem, size = 0x2000, scoped, tag = 'scratch operand']
  #allocation3 [shape = 'f32[16,1]{1,0:T(8,128)}', space=vmem, size = 0x2000, scoped, tag = 'scratch operand']
  #allocation4 [shape = 'f32[16,1]{1,0:T(8,128)}', space=vmem, size = 0x2000, scoped, tag = 'scratch operand']
  #allocation5 [shape = 'f32[16,1]{1,0:T(8,128)}', space=vmem, size = 0x2000, scoped, tag = 'scratch operand']
  %s0 = inlined_call_operand.vmem [shape: f32[2,16,32], index: 0, kind: input, shape index: {}]
  %s1 = inlined_call_operand.vmem [shape: f32[8,16], index: 1, kind: input, shape index: {}]
  %s2 = inlined_call_operand.vmem [shape: f32[8,1], index: 2, kind: input, shape index: {}]
  %s3 = inlined_call_operand.vmem [shape: f32[16,8], index: 3, kind: input, shape index: {}]
  %s4 = inlined_call_operand.vmem [shape: f32[16,1], index: 4, kind: input, shape index: {}]
  %s5 = inlined_call_operand.hbm [shape: f32[2,2,16], index: 5, kind: output, shape index: {}]
  %s6 = sld [smem:[#allocation0]]
  $region61: #{tpu_custom_call.1} parent=0
    _
  %s8 = ssub.s32 1, %s6
  %s9 = scalar_select 0, %s8, %s6
  $region1: #{tpu_custom_call.1} parent=0
    #allocation6 [shape = 'u8[2048]{0}', space=vmem, size = 0x800, scoped, tag = 'output window, operand 0']
    #allocation7 [shape = 's32[2]{0}', space=sflag, size = 0x8, scoped, tag = 'scoped memory for tpu_custom_call.1']
    %10 = vsyncpa [#allocation7], 0
    %s11 = scalar_lea.sflag [#allocation7], 1
    %12 = vsyncpa %s11, 0
    loop: start=0, step=1, limit=4
    $region2: #{tpu_custom_call.1} parent=1 // loop_pre_header
      _
    $region3: #{tpu_custom_call.1} parent=1 // loop_header
      %s14 = sphi 0, %s18
      %p15 = scmp.ge.s32.totalorder %s14, 4
      %s21 = sphi 0, %s33
      %s22 = sphi 0, %s29
      %s23 = sphi 0, %s21
      %s24 = sphi 0, %s22
      %s25 = sphi 0, %s23
      %s26 = sphi 0, %s24
      %s38 = sphi 0, %s40
      %s41 = sphi 0, %s38
      %s42 = sphi 0, %s41
      %s58 = sphi 0, %s42
      %s62 = sphi 0, %s62
      %s64 = sphi 0, %s62
      %s65 = sphi 0, %s64
      %s79 = sphi 0, %s65
      %s83 = sphi 0, %s83
      %s85 = sphi 0, %s83
      %s86 = sphi 0, %s85
      %s100 = sphi 0, %s86
      %s104 = sphi 0, %s104
      %s106 = sphi 0, %s104
      %s107 = sphi 0, %s106
      %s121 = sphi 0, %s107
      %s125 = sphi 0, %s125
      %s127 = sphi 0, %s125
      %s128 = sphi 0, %s127
      %s142 = sphi 0, %s128
      %s148 = sphi 0, %s150
      %s151 = sphi 0, %s148
      %s152 = sphi 0, %s151
      %s168 = sphi 0, %s152
    $region4: #{tpu_custom_call.1} parent=1 // loop_header_branch
      %17 = sbr.rel (%p15) target = $region8
    $region5: #{tpu_custom_call.1} parent=1 // loop_body
      %s19 = ssub.s32 %s14, 1
      %s20 = ssub.s32 %s14, 2
      %s27 = sadd.s32 1, %s22
      %p28 = scmp.ge.s32.totalorder %s27, 1
      %s29 = scalar_select %p28, 0, %s27
      %s30 = sadd.s32 1, %s21
      %s31 = scalar_select %p28, %s30, %s21
      %p32 = scmp.ge.s32.totalorder %s31, 2
      %s33 = scalar_select %p32, 0, %s31
      %s34 = ssub.s32 %s21, %s33
      %s35 = ssub.s32 %s22, %s29
      %s36 = sor.u32 %s34, %s35
      %p37 = scmp.eq.s32.totalorder %s36, 0
      %s39 = sadd.s32 %s38, 1
      %s40 = scalar_select %p37, %s38, %s39
      %p43 = pneg %p37
      %p44 = scmp.eq.s32.totalorder %s14, 1
      %p45 = por %p43, %p44
      %p46 = scmp.ne.s32.totalorder %s38, %s41
      %p47 = scmp.eq.s32.totalorder %s14, 0
      %p48 = por %p46, %p47
      %p49 = scmp.ne.s32.totalorder %s38, %s41
      %p50 = scmp.eq.s32.totalorder %s19, 1
      %p51 = por %p49, %p50
      %p52 = scmp.ne.s32.totalorder %s41, %s42
      %p53 = scmp.eq.s32.totalorder %s19, 0
      %p54 = por %p52, %p53
      %p55 = scmp.ne.s32.totalorder %s41, %s42
      %p56 = scmp.eq.s32.totalorder %s20, 1
      %p57 = por %p55, %p56
      %p59 = scmp.ne.s32.totalorder %s42, %s58
      %p60 = scmp.eq.s32.totalorder %s20, 0
      %p61 = por %p59, %p60
      %s63 = sadd.s32 %s62, 1
      %p66 = scmp.eq.s32.totalorder %s14, 1
      %p67 = scmp.ne.s32.totalorder %s62, %s64
      %p68 = scmp.eq.s32.totalorder %s14, 0
      %p69 = por %p67, %p68
      %p70 = scmp.ne.s32.totalorder %s62, %s64
      %p71 = scmp.eq.s32.totalorder %s19, 1
      %p72 = por %p70, %p71
      %p73 = scmp.ne.s32.totalorder %s64, %s65
      %p74 = scmp.eq.s32.totalorder %s19, 0
      %p75 = por %p73, %p74
      %p76 = scmp.ne.s32.totalorder %s64, %s65
      %p77 = scmp.eq.s32.totalorder %s20, 1
      %p78 = por %p76, %p77
      %p80 = scmp.ne.s32.totalorder %s65, %s79
      %p81 = scmp.eq.s32.totalorder %s20, 0
      %p82 = por %p80, %p81
      %s84 = sadd.s32 %s83, 1
      %p87 = scmp.eq.s32.totalorder %s14, 1
      %p88 = scmp.ne.s32.totalorder %s83, %s85
      %p89 = scmp.eq.s32.totalorder %s14, 0
      %p90 = por %p88, %p89
      %p91 = scmp.ne.s32.totalorder %s83, %s85
      %p92 = scmp.eq.s32.totalorder %s19, 1
      %p93 = por %p91, %p92
      %p94 = scmp.ne.s32.totalorder %s85, %s86
      %p95 = scmp.eq.s32.totalorder %s19, 0
      %p96 = por %p94, %p95
      %p97 = scmp.ne.s32.totalorder %s85, %s86
      %p98 = scmp.eq.s32.totalorder %s20, 1
      %p99 = por %p97, %p98
      %p101 = scmp.ne.s32.totalorder %s86, %s100
      %p102 = scmp.eq.s32.totalorder %s20, 0
      %p103 = por %p101, %p102
      %s105 = sadd.s32 %s104, 1
      %p108 = scmp.eq.s32.totalorder %s14, 1
      %p109 = scmp.ne.s32.totalorder %s104, %s106
      %p110 = scmp.eq.s32.totalorder %s14, 0
      %p111 = por %p109, %p110
      %p112 = scmp.ne.s32.totalorder %s104, %s106
      %p113 = scmp.eq.s32.totalorder %s19, 1
      %p114 = por %p112, %p113
      %p115 = scmp.ne.s32.totalorder %s106, %s107
      %p116 = scmp.eq.s32.totalorder %s19, 0
      %p117 = por %p115, %p116
      %p118 = scmp.ne.s32.totalorder %s106, %s107
      %p119 = scmp.eq.s32.totalorder %s20, 1
      %p120 = por %p118, %p119
      %p122 = scmp.ne.s32.totalorder %s107, %s121
      %p123 = scmp.eq.s32.totalorder %s20, 0
      %p124 = por %p122, %p123
      %s126 = sadd.s32 %s125, 1
      %p129 = scmp.eq.s32.totalorder %s14, 1
      %p130 = scmp.ne.s32.totalorder %s125, %s127
      %p131 = scmp.eq.s32.totalorder %s14, 0
      %p132 = por %p130, %p131
      %p133 = scmp.ne.s32.totalorder %s125, %s127
      %p134 = scmp.eq.s32.totalorder %s19, 1
      %p135 = por %p133, %p134
      %p136 = scmp.ne.s32.totalorder %s127, %s128
      %p137 = scmp.eq.s32.totalorder %s19, 0
      %p138 = por %p136, %p137
      %p139 = scmp.ne.s32.totalorder %s127, %s128
      %p140 = scmp.eq.s32.totalorder %s20, 1
      %p141 = por %p139, %p140
      %p143 = scmp.ne.s32.totalorder %s128, %s142
      %p144 = scmp.eq.s32.totalorder %s20, 0
      %p145 = por %p143, %p144
      %s146 = ssub.s32 %s21, %s33
      %p147 = scmp.eq.s32.totalorder %s146, 0
      %s149 = sadd.s32 %s148, 1
      %s150 = scalar_select %p147, %s148, %s149
      %p153 = pneg %p147
      %p154 = scmp.eq.s32.totalorder %s14, 1
      %p155 = por %p153, %p154
      %p156 = scmp.ne.s32.totalorder %s148, %s151
      %p157 = scmp.eq.s32.totalorder %s14, 0
      %p158 = por %p156, %p157
      %p159 = scmp.ne.s32.totalorder %s148, %s151
      %p160 = scmp.eq.s32.totalorder %s19, 1
      %p161 = por %p159, %p160
      %p162 = scmp.ne.s32.totalorder %s151, %s152
      %p163 = scmp.eq.s32.totalorder %s19, 0
      %p164 = por %p162, %p163
      %p165 = scmp.ne.s32.totalorder %s151, %s152
      %p166 = scmp.eq.s32.totalorder %s20, 1
      %p167 = por %p165, %p166
      %p169 = scmp.ne.s32.totalorder %s152, %s168
      %p170 = scmp.eq.s32.totalorder %s20, 0
      %p171 = por %p169, %p170
      %p172 = scmp.le.s32.totalorder 1, %s14
      %p173 = scmp.lt.s32.totalorder %s14, 3
      %p174 = pnand %p172, %p173
      %p175 = pneg %p174
      // Predicated region
      $region9: #{tpu_custom_call.1} parent=5 // pred_check
        _
      $region10: #{tpu_custom_call.1} parent=5 // pred_check_branch
        %177 = sbr.rel (%p174) target = $region12
      $region11: #{tpu_custom_call.1} parent=5 // pred_region
        %s178 = ssub.s32 %s14, 1
        // Predicated region
        $region13: #{tpu_custom_call.1} parent=11 // pred_check
          %p179 = pneg %p75
        $region14: #{tpu_custom_call.1} parent=11 // pred_check_branch
          %181 = sbr.rel (%p179) target = $region16
        $region15: #{tpu_custom_call.1} parent=11 // pred_region
          _
        $region16: #{tpu_custom_call.1} parent=11 // pred_fallthru
          _
        // Predicated region
        $region17: #{tpu_custom_call.1} parent=11 // pred_check
          %p182 = pneg %p96
        $region18: #{tpu_custom_call.1} parent=11 // pred_check_branch
          %184 = sbr.rel (%p182) target = $region20
        $region19: #{tpu_custom_call.1} parent=11 // pred_region
          _
        $region20: #{tpu_custom_call.1} parent=11 // pred_fallthru
          _
        // Predicated region
        $region21: #{tpu_custom_call.1} parent=11 // pred_check
          %p185 = pneg %p117
        $region22: #{tpu_custom_call.1} parent=11 // pred_check_branch
          %187 = sbr.rel (%p185) target = $region24
        $region23: #{tpu_custom_call.1} parent=11 // pred_region
          _
        $region24: #{tpu_custom_call.1} parent=11 // pred_fallthru
          _
        // Predicated region
        $region25: #{tpu_custom_call.1} parent=11 // pred_check
          %p188 = pneg %p138
        $region26: #{tpu_custom_call.1} parent=11 // pred_check_branch
          %190 = sbr.rel (%p188) target = $region28
        $region27: #{tpu_custom_call.1} parent=11 // pred_region
          _
        $region28: #{tpu_custom_call.1} parent=11 // pred_fallthru
          _
      $region12: #{tpu_custom_call.1} parent=5 // pred_fallthru
        _
      %p191 = scmp.lt.s32.totalorder %s14, 2
      // Predicated region
      $region29: #{tpu_custom_call.1} parent=5 // pred_check
        %p192 = pneg %p191
      $region30: #{tpu_custom_call.1} parent=5 // pred_check_branch
        %194 = sbr.rel (%p192) target = $region32
      $region31: #{tpu_custom_call.1} parent=5 // pred_region
        // Predicated region
        $region33: #{tpu_custom_call.1} parent=31 // pred_check
          %p195 = pneg %p48
        $region34: #{tpu_custom_call.1} parent=31 // pred_check_branch
          %197 = sbr.rel (%p195) target = $region36
        $region35: #{tpu_custom_call.1} parent=31 // pred_region
          %p198 = scmp.lt.s32.totalorder %s21, 1
          %s199 = scalar_select %p198, %s21, 1
          %p200 = scmp.lt.s32.totalorder %s22, 0
          %s201 = scalar_select %p200, %s22, 0
          %s202 = smul.addr %s199, 2
          %s203 = sadd.s32 %s201, %s202
          %s204 = smul.addr %s203, 8
          %s205 = scalar_lea.vmem %s0, %s204
        $region36: #{tpu_custom_call.1} parent=31 // pred_fallthru
          _
      $region32: #{tpu_custom_call.1} parent=5 // pred_fallthru
        _
      %p206 = scmp.le.s32.totalorder 1, %s14
      %p207 = scmp.lt.s32.totalorder %s14, 3
      %p208 = pnand %p206, %p207
      %p209 = pneg %p208
      // Predicated region
      $region37: #{tpu_custom_call.1} parent=5 // pred_check
        _
      $region38: #{tpu_custom_call.1} parent=5 // pred_check_branch
        %211 = sbr.rel (%p208) target = $region40
      $region39: #{tpu_custom_call.1} parent=5 // pred_region
        %s212 = ssub.s32 %s14, 1
        %p213 = scmp.lt.s32.totalorder %s23, 1
        %s214 = scalar_select %p213, %s23, 1
        %p215 = scmp.lt.s32.totalorder %s24, 0
        %s216 = scalar_select %p215, %s24, 0
        %s217 = smul.addr %s214, 2
        %s218 = sadd.s32 %s216, %s217
        %s219 = smul.addr %s218, 8
        %s220 = scalar_lea.vmem %s0, %s219
        %p221 = pneg %p54
        %p222 = pneg %p51
        %p223 = pneg %p75
        %p224 = pneg %p72
        %p225 = pneg %p96
        %p226 = pneg %p93
        %p227 = pneg %p117
        %p228 = pneg %p114
        %p229 = pneg %p138
        %p230 = pneg %p135
        %p231 = pneg %p164
        %p232 = pneg %p161
        %s233 = sand.u32 %s151, 1
        %s234 = scalar_lea.sflag [#allocation7], %s233
        %s235 = sand.u32 %s151, 1
        %s236 = smul.addr %s235, 2
        %s237 = scalar_lea.vmem [#allocation6], %s236
        %p238 = scmp.lt.s32.totalorder %s23, 1
        %s239 = scalar_select %p238, %s23, 1
        %p240 = scmp.lt.s32.totalorder %s24, 0
        %s241 = scalar_select %p240, %s24, 0
        %s242 = smul.addr %s239, 2
        %s243 = sadd.s32 %s241, %s242
        %s244 = smul.addr %s243, 8
        %s245 = scalar_lea.vmem %s0, %s244
        %p246 = scmp.eq.s32.totalorder %s24, 0
        // Predicated region
        $region41: #{tpu_custom_call.1} parent=39 // pred_check
          %p247 = pneg %p246
        $region42: #{tpu_custom_call.1} parent=39 // pred_check_branch
          %249 = sbr.rel (%p247) target = $region44
        $region43: #{tpu_custom_call.1} parent=39 // pred_region
          %vm250 = vcmask 7168
          %251 = vst.msk [vmem:[#allocation2] sm:$0xff] %vm250, -inf
          %252 = vst.msk [vmem:[#allocation2 + $0x8] sm:$0xff] %vm250, -inf
          %253 = vst.msk [vmem:[#allocation3] sm:$0xff] %vm250, 0.0
          %254 = vst.msk [vmem:[#allocation3 + $0x8] sm:$0xff] %vm250, 0.0
          %255 = vst.msk [vmem:[#allocation4] sm:$0xff] %vm250, 0.0
          %256 = vst.msk [vmem:[#allocation4 + $0x8] sm:$0xff] %vm250, 0.0
          %257 = vst.msk [vmem:[#allocation5] sm:$0xff] %vm250, 0.0
          %258 = vst.msk [vmem:[#allocation5 + $0x8] sm:$0xff] %vm250, 0.0
        $region44: #{tpu_custom_call.1} parent=39 // pred_fallthru
          _
        %v259 = vld [vmem:[%s245] sm:$0xff]
        %v260 = vld [vmem:[%s245 + $0x8] sm:$0xff]
        %v261 = vld [vmem:[%s1] sm:$0xff]
        %v262 = vld [vmem:[%s2] sm:$0xff]
        %264 = vset.pattern.permute.xlu0 0
        %265 = vperm.xlu0 %264, %v262
        %v266 = vpop.permute.xlu0 %265
        %vm268 = vcmask 130048
        %v270 = vsel %vm268, %v261, 0
        %272 = vmatprep.subr.mxu0 0.0
        %273 = vmatpush1.msra.mxu0 %v259
        %274 = vmatprep.subr.mxu0 0.0
        %275 = vmatpush1.msra.mxu0 %v260
        %276 = vmatprep.subr.mxu0 0.0
        %277 = vmatpush1.msra.mxu0 0.0
        %278 = vmatprep.subr.mxu0 0.0
        %279 = vmatpush1.msra.mxu0 0.0
        %280 = vmatprep.subr.mxu0 0.0
        %281 = vmatpush1.msra.mxu0 0.0
        %282 = vmatprep.subr.mxu0 0.0
        %283 = vmatpush1.msra.mxu0 0.0
        %284 = vmatprep.subr.mxu0 0.0
        %285 = vmatpush1.msra.mxu0 0.0
        %286 = vmatprep.subr.mxu0 0.0
        %287 = vmatpush1.msra.mxu0 0.0
        %288 = vmatprep.subr.mxu0 0.0
        %289 = vmatpush1.msra.mxu0 0.0
        %290 = vmatprep.subr.mxu0 0.0
        %291 = vmatpush1.msra.mxu0 0.0
        %292 = vmatprep.subr.mxu0 0.0
        %293 = vmatpush1.msra.mxu0 0.0
        %294 = vmatprep.subr.mxu0 0.0
        %295 = vmatpush1.msra.mxu0 0.0
        %296 = vmatprep.subr.mxu0 0.0
        %297 = vmatpush1.msra.mxu0 0.0
        %298 = vmatprep.subr.mxu0 0.0
        %299 = vmatpush1.msra.mxu0 0.0
        %300 = vmatprep.subr.mxu0 0.0
        %301 = vmatpush1.msra.mxu0 0.0
        %302 = vmatprep.subr.mxu0 0.0
        %303 = vmatpush1.msra.mxu0 0.0
        %304 = vmatprep.subr.mxu0 0.0
        %305 = vmatpush1.msra.mxu0 0.0
        %306 = vmatprep.subr.mxu0 0.0
        %307 = vmatpush1.msra.mxu0 0.0
        %308 = vmatprep.subr.mxu0 0.0
        %309 = vmatpush1.msra.mxu0 0.0
        %310 = vmatprep.subr.mxu0 0.0
        %311 = vmatpush1.msra.mxu0 0.0
        %312 = vmatprep.subr.mxu0 0.0
        %313 = vmatpush1.msra.mxu0 0.0
        %314 = vmatprep.subr.mxu0 0.0
        %315 = vmatpush1.msra.mxu0 0.0
        %316 = vmatprep.subr.mxu0 0.0
        %317 = vmatpush1.msra.mxu0 0.0
        %318 = vmatprep.subr.mxu0 0.0
        %319 = vmatpush1.msra.mxu0 0.0
        %320 = vmatprep.subr.mxu0 0.0
        %321 = vmatpush1.msra.mxu0 0.0
        %322 = vmatprep.subr.mxu0 0.0
        %323 = vmatpush1.msra.mxu0 0.0
        %324 = vmatprep.subr.mxu0 0.0
        %325 = vmatpush1.msra.mxu0 0.0
        %326 = vmatprep.subr.mxu0 0.0
        %327 = vmatpush1.msra.mxu0 0.0
        %328 = vmatprep.subr.mxu0 0.0
        %329 = vmatpush1.msra.mxu0 0.0
        %330 = vmatprep.subr.mxu0 0.0
        %331 = vmatpush1.msra.mxu0 0.0
        %332 = vmatprep.subr.mxu0 0.0
        %333 = vmatpush1.msra.mxu0 0.0
        %334 = vmatprep.subr.mxu0 0.0
        %335 = vmatpush1.msra.mxu0 0.0
        %336 = vmatprep.mubr.f32.mxu0 0.0
        %337 = vmatmul.mubr.f32.gmra.mrb[0].mxu0 %v270
        %v338 = vpop.f32.mrb[0].mxu0
        %v339 = vadd.f32 %v266, %v338
        %v340 = vpop.f32.mrb[0].mxu0
        %341 = vdwg.mxu0
        %v342 = vtanh.pop %v339
        %v343 = vld [vmem:[%s3] sm:$0xff]
        %v344 = vld [vmem:[%s3 + $0x8] sm:$0xff]
        %v345 = vld [vmem:[%s4] sm:$0xff]
        %v346 = vld [vmem:[%s4 + $0x8] sm:$0xff]
        %348 = vset.pattern.permute.xlu0 0
        %349 = vperm.xlu0 %348, %v345
        %v350 = vpop.permute.xlu0 %349
        %353 = vset.pattern.permute.xlu0 0
        %354 = vperm.xlu0 %353, %v346
        %v355 = vpop.permute.xlu0 %354
        %vm357 = vcmask 64512
        %v359 = vsel %vm357, %v343, 0
        %v362 = vsel %vm357, %v344, 0
        %364 = vmatprep.subr.mxu0 0.0
        %365 = vmatpush1.msra.mxu0 %v342
        %366 = vmatprep.subr.mxu0 0.0
        %367 = vmatpush1.msra.mxu0 0.0
        %368 = vmatprep.subr.mxu0 0.0
        %369 = vmatpush1.msra.mxu0 0.0
        %370 = vmatprep.subr.mxu0 0.0
        %371 = vmatpush1.msra.mxu0 0.0
        %372 = vmatprep.subr.mxu0 0.0
        %373 = vmatpush1.msra.mxu0 0.0
        %374 = vmatprep.subr.mxu0 0.0
        %375 = vmatpush1.msra.mxu0 0.0
        %376 = vmatprep.subr.mxu0 0.0
        %377 = vmatpush1.msra.mxu0 0.0
        %378 = vmatprep.subr.mxu0 0.0
        %379 = vmatpush1.msra.mxu0 0.0
        %380 = vmatprep.subr.mxu0 0.0
        %381 = vmatpush1.msra.mxu0 0.0
        %382 = vmatprep.subr.mxu0 0.0
        %383 = vmatpush1.msra.mxu0 0.0
        %384 = vmatprep.subr.mxu0 0.0
        %385 = vmatpush1.msra.mxu0 0.0
        %386 = vmatprep.subr.mxu0 0.0
        %387 = vmatpush1.msra.mxu0 0.0
        %388 = vmatprep.subr.mxu0 0.0
        %389 = vmatpush1.msra.mxu0 0.0
        %390 = vmatprep.subr.mxu0 0.0
        %391 = vmatpush1.msra.mxu0 0.0
        %392 = vmatprep.subr.mxu0 0.0
        %393 = vmatpush1.msra.mxu0 0.0
        %394 = vmatprep.subr.mxu0 0.0
        %395 = vmatpush1.msra.mxu0 0.0
        %396 = vmatprep.subr.mxu0 0.0
        %397 = vmatpush1.msra.mxu0 0.0
        %398 = vmatprep.subr.mxu0 0.0
        %399 = vmatpush1.msra.mxu0 0.0
        %400 = vmatprep.subr.mxu0 0.0
        %401 = vmatpush1.msra.mxu0 0.0
        %402 = vmatprep.subr.mxu0 0.0
        %403 = vmatpush1.msra.mxu0 0.0
        %404 = vmatprep.subr.mxu0 0.0
        %405 = vmatpush1.msra.mxu0 0.0
        %406 = vmatprep.subr.mxu0 0.0
        %407 = vmatpush1.msra.mxu0 0.0
        %408 = vmatprep.subr.mxu0 0.0
        %409 = vmatpush1.msra.mxu0 0.0
        %410 = vmatprep.subr.mxu0 0.0
        %411 = vmatpush1.msra.mxu0 0.0
        %412 = vmatprep.subr.mxu0 0.0
        %413 = vmatpush1.msra.mxu0 0.0
        %414 = vmatprep.subr.mxu0 0.0
        %415 = vmatpush1.msra.mxu0 0.0
        %416 = vmatprep.subr.mxu0 0.0
        %417 = vmatpush1.msra.mxu0 0.0
        %418 = vmatprep.subr.mxu0 0.0
        %419 = vmatpush1.msra.mxu0 0.0
        %420 = vmatprep.subr.mxu0 0.0
        %421 = vmatpush1.msra.mxu0 0.0
        %422 = vmatprep.subr.mxu0 0.0
        %423 = vmatpush1.msra.mxu0 0.0
        %424 = vmatprep.subr.mxu0 0.0
        %425 = vmatpush1.msra.mxu0 0.0
        %426 = vmatprep.subr.mxu0 0.0
        %427 = vmatpush1.msra.mxu0 0.0
        %428 = vmatprep.mubr.f32.mxu0 0.0
        %429 = vmatmul.mubr.f32.gmra.mrb[0].mxu0 %v359
        %v430 = vpop.f32.mrb[0].mxu0
        %v431 = vadd.f32 %v350, %v430
        %v432 = vpop.f32.mrb[0].mxu0
        %433 = vmatprep.mubr.f32.mxu0 0.0
        %434 = vmatmul.mubr.f32.gmra.mrb[0].mxu0 %v362
        %v435 = vpop.f32.mrb[0].mxu0
        %v436 = vadd.f32 %v355, %v435
        %v437 = vpop.f32.mrb[0].mxu0
        %438 = vdwg.mxu0
        %vm439 = vcmask 261120
        %v440 = vsel %vm439, %v431, -inf
        %441 = vmax.xlane.f32.xlu0 %v440
        %v442 = vpop.xlane.xlu0 %441
        %v443 = vsel %vm439, %v436, -inf
        %444 = vmax.xlane.f32.xlu0 %v443
        %v445 = vpop.xlane.xlu0 %444
        %v446 = vld [vmem:[#allocation2] sm:$0xff]
        %v447 = vld [vmem:[#allocation2 + $0x8] sm:$0xff]
        %v448 = vmax.f32 %v446, %v442
        %v449 = vmax.f32 %v447, %v445
        %v450 = vsub.f32 %v446, %v448
        %v451 = vsub.f32 %v447, %v449
        %v452 = vmul.f32 %v450, 1.442695
        %v453 = vpow.pop %v452
        %v454 = vmul.f32 %v451, 1.442695
        %v455 = vpow.pop %v454
        %457 = vset.pattern.permute.xlu0 0
        %458 = vperm.xlu0 %457, %v448
        %v459 = vpop.permute.xlu0 %458
        %462 = vset.pattern.permute.xlu0 0
        %463 = vperm.xlu0 %462, %v449
        %v464 = vpop.permute.xlu0 %463
        %v466 = vsub.f32 %v431, %v459
        %v467 = vsub.f32 %v436, %v464
        %v468 = vmul.f32 %v466, 1.442695
        %v469 = vpow.pop %v468
        %v470 = vmul.f32 %v467, 1.442695
        %v471 = vpow.pop %v470
        %v472 = vmul.f32 %v469, %v259
        %v473 = vmul.f32 %v471, %v260
        %v474 = vmul.f32 %v472, %v259
        %v475 = vmul.f32 %v473, %v260
        %v476 = vld [vmem:[#allocation3] sm:$0xff]
        %v477 = vld [vmem:[#allocation3 + $0x8] sm:$0xff]
        %v478 = vmul.f32 %v453, %v476
        %v479 = vmul.f32 %v455, %v477
        %v480 = vsel %vm439, %v469, 0.0
        %481 = vadd.xlane.f32.xlu0 %v480
        %v482 = vpop.xlane.xlu0 %481
        %v483 = vsel %vm439, %v471, 0.0
        %484 = vadd.xlane.f32.xlu0 %v483
        %v485 = vpop.xlane.xlu0 %484
        %v486 = vadd.f32 %v478, %v482
        %v487 = vadd.f32 %v479, %v485
        %vm488 = vcmask 7168
        %489 = vst.msk [vmem:[#allocation3] sm:$0xff] %vm488, %v486
        %490 = vst.msk [vmem:[#allocation3 + $0x8] sm:$0xff] %vm488, %v487
        %v491 = vld [vmem:[#allocation4] sm:$0xff]
        %v492 = vld [vmem:[#allocation4 + $0x8] sm:$0xff]
        %v493 = vmul.f32 %v453, %v491
        %v494 = vmul.f32 %v455, %v492
        %v495 = vsel %vm439, %v472, 0.0
        %496 = vadd.xlane.f32.xlu0 %v495
        %v497 = vpop.xlane.xlu0 %496
        %v498 = vsel %vm439, %v473, 0.0
        %499 = vadd.xlane.f32.xlu0 %v498
        %v500 = vpop.xlane.xlu0 %499
        %v501 = vadd.f32 %v493, %v497
        %v502 = vadd.f32 %v494, %v500
        %503 = vst.msk [vmem:[#allocation4] sm:$0xff] %vm488, %v501
        %504 = vst.msk [vmem:[#allocation4 + $0x8] sm:$0xff] %vm488, %v502
        %v505 = vld [vmem:[#allocation5] sm:$0xff]
        %v506 = vld [vmem:[#allocation5 + $0x8] sm:$0xff]
        %v507 = vmul.f32 %v453, %v505
        %v508 = vmul.f32 %v455, %v506
        %v509 = vsel %vm439, %v474, 0.0
        %510 = vadd.xlane.f32.xlu0 %v509
        %v511 = vpop.xlane.xlu0 %510
        %v512 = vsel %vm439, %v475, 0.0
        %513 = vadd.xlane.f32.xlu0 %v512
        %v514 = vpop.xlane.xlu0 %513
        %v515 = vadd.f32 %v507, %v511
        %v516 = vadd.f32 %v508, %v514
        %517 = vst.msk [vmem:[#allocation5] sm:$0xff] %vm488, %v515
        %518 = vst.msk [vmem:[#allocation5 + $0x8] sm:$0xff] %vm488, %v516
        %519 = vst.msk [vmem:[#allocation2] sm:$0xff] %vm488, %v448
        %520 = vst.msk [vmem:[#allocation2 + $0x8] sm:$0xff] %vm488, %v449
        // Predicated region
        $region45: #{tpu_custom_call.1} parent=39 // pred_check
          %p521 = pneg %p246
        $region46: #{tpu_custom_call.1} parent=39 // pred_check_branch
          %523 = sbr.rel (%p521) target = $region48
        $region47: #{tpu_custom_call.1} parent=39 // pred_region
          %v524 = vld [vmem:[#allocation3] sm:$0xff]
          %v525 = vld [vmem:[#allocation3 + $0x8] sm:$0xff]
          %v526 = vrcp.pop %v524
          %v527 = vrcp.pop %v525
          %v528 = vld [vmem:[#allocation4] sm:$0xff]
          %v529 = vld [vmem:[#allocation4 + $0x8] sm:$0xff]
          %v530 = vmul.f32 %v528, %v526
          %v531 = vmul.f32 %v529, %v527
          %v532 = vld [vmem:[#allocation5] sm:$0xff]
          %v533 = vld [vmem:[#allocation5 + $0x8] sm:$0xff]
          %v534 = vmul.f32 %v532, %v526
          %v535 = vmul.f32 %v533, %v527
          %v536 = vmul.f32 %v530, %v530
          %v537 = vmul.f32 %v531, %v531
          %v538 = vsub.f32 %v534, %v536
          %v539 = vsub.f32 %v535, %v537
          %v540 = vmax.f32 %v538, 1e-09
          %v541 = vmax.f32 %v539, 1e-09
          %v542 = vrsqrt.pop %v540
          %v543 = vmul.f32 %v540, %v542
          %vm544 = vcmp.eq.f32.partialorder %v540, inf
          %v545 = vsel %vm544, %v540, %v543
          %vm546 = vcmp.eq.f32.partialorder %v540, 0.0
          %v547 = vand.u32 %v540, 2147483648
          %v548 = vsel %vm546, %v547, %v545
          %v549 = vrsqrt.pop %v541
          %v550 = vmul.f32 %v541, %v549
          %vm551 = vcmp.eq.f32.partialorder %v541, inf
          %v552 = vsel %vm551, %v541, %v550
          %vm553 = vcmp.eq.f32.partialorder %v541, 0.0
          %v554 = vand.u32 %v541, 2147483648
          %v555 = vsel %vm553, %v554, %v552
          %v556 = vadd.f32 %v530, 0.0
          %v557 = vadd.f32 %v531, 0.0
          %560 = vset.pattern.permute.xlu0 0
          %561 = vperm.xlu0 %560, %v556
          %v562 = vpop.permute.xlu0 %561
          %563 = vset.pattern.permute.xlu0 0
          %564 = vperm.xlu0 %563, %v557
          %v565 = vpop.permute.xlu0 %564
          %v566 = vlaneseq
          %v567 = vand.u32 %v566, 127
          %v568 = vlaneseq
          %v569 = vshrl.u32 %v568, 7
          %v570 = vsub.s32 %v567, %v569
          %v571 = vrot.slane %v562, %v570
          %v572 = vadd.s32 %v567, 4294967288
          %v573 = vlaneseq
          %v574 = vshrl.u32 %v573, 7
          %v575 = vsub.s32 %v572, %v574
          %v576 = vrot.slane %v565, %v575
          %vm577 = vcmask 130112
          %v578 = vsel %vm577, %v576, %v571
          %vm580 = vcmask 122880
          %581 = vst.msk [vmem:[%s237] sm:$0x1] %vm580, %v578
          %v582 = vadd.f32 %v548, 0.0
          %v583 = vadd.f32 %v555, 0.0
          %586 = vset.pattern.permute.xlu0 0
          %587 = vperm.xlu0 %586, %v582
          %v588 = vpop.permute.xlu0 %587
          %589 = vset.pattern.permute.xlu0 0
          %590 = vperm.xlu0 %589, %v583
          %v591 = vpop.permute.xlu0 %590
          %v592 = vlaneseq
          %v593 = vshrl.u32 %v592, 7
          %v594 = vsub.s32 %v567, %v593
          %v595 = vrot.slane %v588, %v594
          %v596 = vlaneseq
          %v597 = vshrl.u32 %v596, 7
          %v598 = vsub.s32 %v572, %v597
          %v599 = vrot.slane %v591, %v598
          %v600 = vsel %vm577, %v599, %v595
          %602 = vst.msk [vmem:[%s237 + $0x1] sm:$0x1] %vm580, %v600
        $region48: #{tpu_custom_call.1} parent=39 // pred_fallthru
          _
        %s603 = sand.u32 %s151, 1
        %s604 = scalar_lea.sflag [#allocation7], %s603
        %s605 = sand.u32 %s151, 1
        %s606 = smul.addr %s605, 2
        %s607 = scalar_lea.vmem [#allocation6], %s606
        // Predicated region
        $region49: #{tpu_custom_call.1} parent=39 // pred_check
          %p608 = pneg %p161
        $region50: #{tpu_custom_call.1} parent=39 // pred_check_branch
          %610 = sbr.rel (%p608) target = $region52
        $region51: #{tpu_custom_call.1} parent=39 // pred_region
          %s612 = ssub.s32 32, 32
          %613 = vsyncadd %s604, %s612
          %s614 = smul.addr %s23, 32
          %s615 = scalar_lea.hbm %s5, %s614
          %s617 = sshll.u32 %s607, 4
          %s618 = int_to_ptr.vmem [resolvable:$true] %s617
          %620 = dma.vmem_to_hbm [thread:$0]  %s618, 32, %s615, %s604
        $region52: #{tpu_custom_call.1} parent=39 // pred_fallthru
          _
      $region40: #{tpu_custom_call.1} parent=5 // pred_fallthru
        _
      %p621 = scmp.le.s32.totalorder 2, %s14
      // Predicated region
      $region53: #{tpu_custom_call.1} parent=5 // pred_check
        %p622 = pneg %p621
      $region54: #{tpu_custom_call.1} parent=5 // pred_check_branch
        %624 = sbr.rel (%p622) target = $region56
      $region55: #{tpu_custom_call.1} parent=5 // pred_region
        %s625 = ssub.s32 %s14, 2
        // Predicated region
        $region57: #{tpu_custom_call.1} parent=55 // pred_check
          %p626 = pneg %p167
        $region58: #{tpu_custom_call.1} parent=55 // pred_check_branch
          %628 = sbr.rel (%p626) target = $region60
        $region59: #{tpu_custom_call.1} parent=55 // pred_region
          %s629 = sand.u32 %s152, 1
          %s630 = scalar_lea.sflag [#allocation7], %s629
          %s631 = sand.u32 %s152, 1
          %s632 = smul.addr %s631, 2
          %s633 = scalar_lea.vmem [#allocation6], %s632
          %634 = dma.done %s630, 32
        $region60: #{tpu_custom_call.1} parent=55 // pred_fallthru
          _
      $region56: #{tpu_custom_call.1} parent=5 // pred_fallthru
        _
    $region6: #{tpu_custom_call.1} parent=1 // loop_footer
      %s18 = sadd.s32 1, %s14
    $region7: #{tpu_custom_call.1} parent=1 // loop_footer_branch
      %13 = sbr.rel target = $region3
    $region8: #{tpu_custom_call.1} parent=1 // loop_exit
      _
    %635 = vsyncpa [#allocation7], 1
    %s636 = scalar_lea.sflag [#allocation7], 1
    %637 = vsyncpa %s636, 1

</llo_original>
